<compile_context>
chip_gen: v7x
topology: tpu7x:2x2x1
jax: 0.10.0
libtpu: 0.0.40
codegen_flags: <defaults>
</compile_context>

<pallas_src>
import functools
import math

import jax
import jax.numpy as jnp
from jax import lax
from jax.experimental import pallas as pl
from jax.experimental.pallas import tpu as pltpu

FEAT_DIM = 32       # small synthetic version of feat_dim=1024
NUM_HEADS = 4       # small synthetic version of num_heads=8
HEAD_DIM = FEAT_DIM // NUM_HEADS
LN_EPS = 1e-5
MXU_DTYPE = jnp.bfloat16   # matmul operand dtype (accumulation stays f32)


def _layernorm_fused(x, gamma, beta):
    """LayerNorm with fused statistics: var = E[x^2] - mu^2 (single pass)."""
    mu = jnp.mean(x, axis=-1, keepdims=True)
    mean_sq = jnp.mean(x * x, axis=-1, keepdims=True)
    var = mean_sq - mu * mu
    return (x - mu) * lax.rsqrt(var + LN_EPS) * gamma + beta


def _layernorm_ref(x, gamma, beta):
    """Two-pass LayerNorm mirroring PyTorch nn.LayerNorm (reference only)."""
    mu = jnp.mean(x, axis=-1, keepdims=True)
    var = jnp.mean((x - mu) ** 2, axis=-1, keepdims=True)
    return (x - mu) * lax.rsqrt(var + LN_EPS) * gamma + beta


def _gelu_exact(x):
    # nn.GELU() default = exact erf-based gelu
    return 0.5 * x * (1.0 + lax.erf(x / jnp.sqrt(jnp.float32(2.0))))


def _block_kernel(num_heads, kv_block,
                  delta_ref,
                  g1_ref, bt1_ref,
                  wqkv_ref, bqkv_ref,
                  wo_ref, bo_ref,
                  g2_ref, bt2_ref,
                  w1_ref, bm1_ref,
                  w2_ref, bm2_ref,
                  out_ref,
                  ctx_ref):
    x3 = delta_ref[...]                      # (Bb, S, D) original delta (residual)
    Bb, S, D = x3.shape
    dh = D // num_heads
    N = Bb * S
    n_kv = -(-S // kv_block)                 # static number of kv chunks

    x = x3.reshape(N, D).astype(jnp.float32)             # flatten rows
    mx = lambda a: a.astype(MXU_DTYPE)                    # MXU operand cast

    # ---- LayerNorm 1 (f32, VPU, fused stats) -------------------------------
    xn = _layernorm_fused(x, g1_ref[0], bt1_ref[0])

    # ---- Fused QKV projection (one wide MXU pass, bf16 x bf16 -> f32) ------
    # 1/sqrt(dh) softmax scale is already folded into the Wq / bq columns.
    qkv = jnp.dot(mx(xn), wqkv_ref[...],
                  preferred_element_type=jnp.float32) + bqkv_ref[0]   # (N, 3D)
    qkv3 = qkv.reshape(Bb, S, 3 * D)

    # ---- Multi-head self-attention: online softmax over kv chunks, ---------
    # ---- per-head context written into a (N, D) VMEM scratch ---------------
    for h in range(num_heads):                                        # static unroll
        qh = qkv3[:, :, h * dh:(h + 1) * dh]                          # (Bb, S, dh)
        kh = qkv3[:, :, D + h * dh:D + (h + 1) * dh]
        vh = qkv3[:, :, 2 * D + h * dh:2 * D + (h + 1) * dh]

        m_i = jnp.full((Bb, S, 1), -jnp.inf, jnp.float32)
        l_i = jnp.zeros((Bb, S, 1), jnp.float32)
        acc = jnp.zeros((Bb, S, dh), jnp.float32)
        for c in range(n_kv):                                         # static unroll
            lo = c * kv_block
            hi = min(S, lo + kv_block)
            kc = kh[:, lo:hi, :]
            vc = vh[:, lo:hi, :]
            s = jnp.einsum('bqd,bkd->bqk', mx(qh), mx(kc),
                           preferred_element_type=jnp.float32)        # (Bb, S, tk)
            m_new = jnp.maximum(m_i, jnp.max(s, axis=-1, keepdims=True))
            alpha = jnp.exp(m_i - m_new)
            p = jnp.exp(s - m_new)
            l_i = alpha * l_i + jnp.sum(p, axis=-1, keepdims=True)
            acc = alpha * acc + jnp.einsum('bqk,bkd->bqd', mx(p), mx(vc),
                                           preferred_element_type=jnp.float32)
            m_i = m_new

        # deferred softmax normalization on (Bb,S,dh); reciprocal on the EUP.
        ctx = acc * pl.reciprocal(l_i, approx=True)
        ctx_ref[:, h * dh:(h + 1) * dh] = ctx.reshape(N, dh)

    # ---- Single fused output projection over all heads (full-K matmul) -----
    attn = jnp.dot(mx(ctx_ref[...]), wo_ref[...],
                   preferred_element_type=jnp.float32) + bo_ref[0]
    attn_res = attn + x                                               # residual 1

    # ---- LayerNorm 2 + MLP --------------------------------------------------
    xn2 = _layernorm_fused(attn_res, g2_ref[0], bt2_ref[0])
    hmid = jnp.dot(mx(xn2), w1_ref[...],
                   preferred_element_type=jnp.float32) + bm1_ref[0]
    hmid = _gelu_exact(hmid)
    mlp = jnp.dot(mx(hmid), w2_ref[...],
                  preferred_element_type=jnp.float32) + bm2_ref[0]

    out_ref[...] = (mlp + attn_res).reshape(Bb, S, D).astype(out_ref.dtype)


def delta_self_transformer_block(x, kparams, *, num_heads=NUM_HEADS,
                                 batch_block=None, kv_block=None,
                                 vmem_limit_bytes=None):
    delta, embedding = x
    B, S, D = delta.shape

    if batch_block is None:
        # grid >= 2 keeps both v7x TensorCores busy (grid axis is "parallel").
        # On v5e/v6e (single TensorCore) pass batch_block=B to avoid extra
        # per-grid-step overhead and maximize MXU M-dim fill.
        batch_block = B // 2 if (B >= 2 and B % 2 == 0) else B
    assert B % batch_block == 0

    if kv_block is None:
        kv_block = min(S, 256)     # tk=256 at production S on v6e/v7x

    # Grid-invariant weights/biases: whole-array VMEM residency, single
    # buffer, single DMA (no per-step double-buffered weight traffic).
    weight_specs = [pl.BlockSpec(memory_space=pltpu.MemorySpace.VMEM)
                    for _ in range(12)]

    in_specs = [pl.BlockSpec((batch_block, S, D), lambda b: (b, 0, 0)),  # delta
                ] + weight_specs

    kernel = functools.partial(_block_kernel, num_heads, kv_block)

    cp_kwargs = dict(dimension_semantics=("parallel",))
    if vmem_limit_bytes is not None:
        # Generation-specific at production size: ~48-56 MiB on v7x (64 MiB
        # total), 64-100 MiB on v6e (128 MiB total). Synthetic size needs none.
        cp_kwargs["vmem_limit_bytes"] = vmem_limit_bytes

    out = pl.pallas_call(
        kernel,
        out_shape=jax.ShapeDtypeStruct((B, S, D), delta.dtype),
        grid_spec=pltpu.PrefetchScalarGridSpec(
            num_scalar_prefetch=0,
            grid=(B // batch_block,),
            in_specs=in_specs,
            out_specs=pl.BlockSpec((batch_block, S, D), lambda b: (b, 0, 0)),
            scratch_shapes=[pltpu.VMEM((batch_block * S, D), jnp.float32)],
        ),
        compiler_params=pltpu.CompilerParams(**cp_kwargs),
    )(delta, *kparams)

    return (out, embedding)


# ----------------------------------------------------------------------------
# Parameters: PyTorch-style f32 params (for the reference) and the fused /
# folded / transposed / bf16 params consumed by the kernel.
# ----------------------------------------------------------------------------
def make_torch_params(key, D):
    """f32 parameters with the same shapes / semantics as the PyTorch module."""
    H2 = 2 * D
    ks = jax.random.split(key, 8)
    std = 0.02
    return dict(
        g1=jnp.ones((D,), jnp.float32), bt1=jnp.zeros((D,), jnp.float32),
        in_proj_w=jax.random.normal(ks[0], (3 * D, D), jnp.float32) * std,
        in_proj_b=jax.random.normal(ks[1], (3 * D,), jnp.float32) * std,
        wo=jax.random.normal(ks[2], (D, D), jnp.float32) * std,    # (out, in)
        bo=jax.random.normal(ks[3], (D,), jnp.float32) * std,
        g2=jnp.ones((D,), jnp.float32), bt2=jnp.zeros((D,), jnp.float32),
        w1=jax.random.normal(ks[4], (H2, D), jnp.float32) * std,   # (out, in)
        b1=jax.random.normal(ks[5], (H2,), jnp.float32) * std,
        w2=jax.random.normal(ks[6], (D, H2), jnp.float32) * std,   # (out, in)
        b2=jnp.zeros((D,), jnp.float32) + jax.random.normal(ks[7], (D,), jnp.float32) * std,
    )


def prep_kernel_params(tp, D, num_heads, mxu_dtype=MXU_DTYPE):
    """Fuse QKV, fold the 1/sqrt(dh) scale into Wq/bq, pre-transpose weights to
    (in, out), cast matmul weights to the MXU dtype; biases / LN params stay f32.
    TODO(synk): on v7x evaluate fp8 weight casts with per-channel scales."""
    dh = D // num_heads
    scale = jnp.float32(1.0 / math.sqrt(dh))
    wq, wk, wv = jnp.split(tp['in_proj_w'], 3, axis=0)     # each (D, D), (out, in)
    bq, bk, bv = jnp.split(tp['in_proj_b'], 3)
    wqkv = jnp.concatenate([(wq * scale).T, wk.T, wv.T], axis=1)    # (D, 3D)
    bqkv = jnp.concatenate([bq * scale, bk, bv])[None, :]           # (1, 3D)
    return (
        tp['g1'][None, :], tp['bt1'][None, :],
        wqkv.astype(mxu_dtype), bqkv,
        tp['wo'].T.astype(mxu_dtype), tp['bo'][None, :],
        tp['g2'][None, :], tp['bt2'][None, :],
        tp['w1'].T.astype(mxu_dtype), tp['b1'][None, :],
        tp['w2'].T.astype(mxu_dtype), tp['b2'][None, :],
    )


def reference_block(x, tp, num_heads):
    """Pure-JAX f32 reference mirroring the PyTorch forward."""
    delta, embedding = x
    B, S, D = delta.shape
    dh = D // num_heads
    xn = _layernorm_ref(delta, tp['g1'], tp['bt1'])
    wq, wk, wv = jnp.split(tp['in_proj_w'], 3, axis=0)
    bq, bk, bv = jnp.split(tp['in_proj_b'], 3)
    q = xn @ wq.T + bq
    k = xn @ wk.T + bk
    v = xn @ wv.T + bv
    qh = q.reshape(B, S, num_heads, dh).transpose(0, 2, 1, 3)
    kh = k.reshape(B, S, num_heads, dh).transpose(0, 2, 1, 3)
    vh = v.reshape(B, S, num_heads, dh).transpose(0, 2, 1, 3)
    scores = jnp.einsum('bhqd,bhkd->bhqk', qh, kh) / math.sqrt(dh)
    p = jax.nn.softmax(scores, axis=-1)
    ctx = jnp.einsum('bhqk,bhkd->bhqd', p, vh).transpose(0, 2, 1, 3).reshape(B, S, D)
    attn = ctx @ tp['wo'].T + tp['bo']
    attn_res = attn + delta
    xn2 = _layernorm_ref(attn_res, tp['g2'], tp['bt2'])
    h = _gelu_exact(xn2 @ tp['w1'].T + tp['b1'])
    out = h @ tp['w2'].T + tp['b2'] + attn_res
    return (out, embedding)


if __name__ == "__main__":
    B, S, D = 2, 8, FEAT_DIM

    key = jax.random.PRNGKey(0)
    kd, ke, kp = jax.random.split(key, 3)
    delta = jax.random.normal(kd, (B, S, D), jnp.float32)
    embedding = jax.random.normal(ke, (B, S, D), jnp.float32)

    tparams = make_torch_params(kp, D)
    kparams = prep_kernel_params(tparams, D, NUM_HEADS)

    out_delta, out_emb = delta_self_transformer_block(
        (delta, embedding), kparams, num_heads=NUM_HEADS)
    out_delta = jax.block_until_ready(out_delta)
    out_emb = jax.block_until_ready(out_emb)

    ref_delta, ref_emb = reference_block((delta, embedding), tparams, NUM_HEADS)

    # bf16 MXU operands + approx reciprocal + fused-stat LN -> slightly
    # loosened tolerance vs the pure-f32 reference (observed error well below).
    assert jnp.allclose(out_delta, ref_delta, atol=3e-3, rtol=3e-3), "delta mismatch"
    assert jnp.allclose(out_emb, ref_emb), "embedding must pass through unchanged"

    print("KERNEL_OK")
</pallas_src>

<mosaic_0001>
module attributes {stable_mosaic.version = 11 : i64} {
  func.func @_block_kernel(%arg0: i32, %arg1: memref<1x8x32xf32, #tpu.memory_space<vmem>>, %arg2: memref<1x32xf32, #tpu.memory_space<vmem>>, %arg3: memref<1x32xf32, #tpu.memory_space<vmem>>, %arg4: memref<32x96xbf16, #tpu.memory_space<vmem>>, %arg5: memref<1x96xf32, #tpu.memory_space<vmem>>, %arg6: memref<32x32xbf16, #tpu.memory_space<vmem>>, %arg7: memref<1x32xf32, #tpu.memory_space<vmem>>, %arg8: memref<1x32xf32, #tpu.memory_space<vmem>>, %arg9: memref<1x32xf32, #tpu.memory_space<vmem>>, %arg10: memref<32x64xbf16, #tpu.memory_space<vmem>>, %arg11: memref<1x64xf32, #tpu.memory_space<vmem>>, %arg12: memref<64x32xbf16, #tpu.memory_space<vmem>>, %arg13: memref<1x32xf32, #tpu.memory_space<vmem>>, %arg14: memref<1x8x32xf32, #tpu.memory_space<vmem>>, %arg15: memref<8x32xf32, #tpu.memory_space<vmem>>) attributes {dimension_semantics = [#tpu.dimension_semantics<parallel>], iteration_bounds = array<i64: 2>, scalar_prefetch = 0 : i64, scratch_operands = 1 : i64, tpu.core_type = #tpu.core_type<tc>, window_params = [{transform_indices = @transform_0, window_bounds = array<i64: 1, 8, 32>}, {pipeline_mode = #tpu.pipeline_mode<synchronous>, transform_indices = @transform_1, window_bounds = array<i64: 1, 32>}, {pipeline_mode = #tpu.pipeline_mode<synchronous>, transform_indices = @transform_2, window_bounds = array<i64: 1, 32>}, {pipeline_mode = #tpu.pipeline_mode<synchronous>, transform_indices = @transform_3, window_bounds = array<i64: 32, 96>}, {pipeline_mode = #tpu.pipeline_mode<synchronous>, transform_indices = @transform_4, window_bounds = array<i64: 1, 96>}, {pipeline_mode = #tpu.pipeline_mode<synchronous>, transform_indices = @transform_5, window_bounds = array<i64: 32, 32>}, {pipeline_mode = #tpu.pipeline_mode<synchronous>, transform_indices = @transform_6, window_bounds = array<i64: 1, 32>}, {pipeline_mode = #tpu.pipeline_mode<synchronous>, transform_indices = @transform_7, window_bounds = array<i64: 1, 32>}, {pipeline_mode = #tpu.pipeline_mode<synchronous>, transform_indices = @transform_8, window_bounds = array<i64: 1, 32>}, {pipeline_mode = #tpu.pipeline_mode<synchronous>, transform_indices = @transform_9, window_bounds = array<i64: 32, 64>}, {pipeline_mode = #tpu.pipeline_mode<synchronous>, transform_indices = @transform_10, window_bounds = array<i64: 1, 64>}, {pipeline_mode = #tpu.pipeline_mode<synchronous>, transform_indices = @transform_11, window_bounds = array<i64: 64, 32>}, {pipeline_mode = #tpu.pipeline_mode<synchronous>, transform_indices = @transform_12, window_bounds = array<i64: 1, 32>}, {transform_indices = @transform_13, window_bounds = array<i64: 1, 8, 32>}]} {
    %c0 = arith.constant 0 : index
    %c0_0 = arith.constant 0 : index
    %c0_1 = arith.constant 0 : index
    %0 = vector.load %arg1[%c0, %c0_0, %c0_1] : memref<1x8x32xf32, #tpu.memory_space<vmem>>, vector<1x8x32xf32>
    %1 = vector.shape_cast %0 : vector<1x8x32xf32> to vector<8x32xf32>
    %c0_2 = arith.constant 0 : index
    %c0_3 = arith.constant 0 : index
    %2 = vector.load %arg2[%c0_2, %c0_3] : memref<1x32xf32, #tpu.memory_space<vmem>>, vector<1x32xf32>
    %3 = vector.shape_cast %2 : vector<1x32xf32> to vector<32xf32>
    %c0_4 = arith.constant 0 : index
    %c0_5 = arith.constant 0 : index
    %4 = vector.load %arg3[%c0_4, %c0_5] : memref<1x32xf32, #tpu.memory_space<vmem>>, vector<1x32xf32>
    %5 = vector.shape_cast %4 : vector<1x32xf32> to vector<32xf32>
    %cst = arith.constant dense<0.000000e+00> : vector<8xf32>
    %6 = vector.multi_reduction <add>, %1, %cst [1] : vector<8x32xf32> to vector<8xf32>
    %7 = vector.shape_cast %6 : vector<8xf32> to vector<8x1xf32>
    %cst_6 = arith.constant 3.200000e+01 : f32
    %8 = vector.broadcast %cst_6 : f32 to vector<8x1xf32>
    %9 = arith.divf %7, %8 : vector<8x1xf32>
    %10 = arith.mulf %1, %1 : vector<8x32xf32>
    %cst_7 = arith.constant dense<0.000000e+00> : vector<8xf32>
    %11 = vector.multi_reduction <add>, %10, %cst_7 [1] : vector<8x32xf32> to vector<8xf32>
    %12 = vector.shape_cast %11 : vector<8xf32> to vector<8x1xf32>
    %cst_8 = arith.constant 3.200000e+01 : f32
    %13 = vector.broadcast %cst_8 : f32 to vector<8x1xf32>
    %14 = arith.divf %12, %13 : vector<8x1xf32>
    %15 = arith.mulf %9, %9 : vector<8x1xf32>
    %16 = arith.subf %14, %15 : vector<8x1xf32>
    %17 = vector.broadcast %9 : vector<8x1xf32> to vector<8x32xf32>
    %18 = arith.subf %1, %17 : vector<8x32xf32>
    %cst_9 = arith.constant 9.99999974E-6 : f32
    %19 = vector.broadcast %cst_9 : f32 to vector<8x1xf32>
    %20 = arith.addf %16, %19 : vector<8x1xf32>
    %21 = math.rsqrt %20 : vector<8x1xf32>
    %22 = vector.broadcast %21 : vector<8x1xf32> to vector<8x32xf32>
    %23 = arith.mulf %18, %22 : vector<8x32xf32>
    %24 = vector.shape_cast %3 : vector<32xf32> to vector<1x32xf32>
    %25 = vector.broadcast %24 : vector<1x32xf32> to vector<8x32xf32>
    %26 = arith.mulf %23, %25 : vector<8x32xf32>
    %27 = vector.shape_cast %5 : vector<32xf32> to vector<1x32xf32>
    %28 = vector.broadcast %27 : vector<1x32xf32> to vector<8x32xf32>
    %29 = arith.addf %26, %28 : vector<8x32xf32>
    %30 = arith.truncf %29 : vector<8x32xf32> to vector<8x32xbf16>
    %c0_10 = arith.constant 0 : index
    %c0_11 = arith.constant 0 : index
    %31 = vector.load %arg4[%c0_10, %c0_11] : memref<32x96xbf16, #tpu.memory_space<vmem>>, vector<32x96xbf16>
    %cst_12 = arith.constant dense<0.000000e+00> : vector<8x96xf32>
    %32 = tpu.matmul %30, %31, %cst_12 {dimension_numbers = #tpu.dot_dimension_numbers<[1], [0], [0], [1], [0, 0, 1, 1], [], []>} : vector<8x32xbf16>, vector<32x96xbf16>, vector<8x96xf32> -> vector<8x96xf32>
    %c0_13 = arith.constant 0 : index
    %c0_14 = arith.constant 0 : index
    %33 = vector.load %arg5[%c0_13, %c0_14] : memref<1x96xf32, #tpu.memory_space<vmem>>, vector<1x96xf32>
    %34 = vector.shape_cast %33 : vector<1x96xf32> to vector<96xf32>
    %35 = vector.shape_cast %34 : vector<96xf32> to vector<1x96xf32>
    %36 = vector.broadcast %35 : vector<1x96xf32> to vector<8x96xf32>
    %37 = arith.addf %32, %36 : vector<8x96xf32>
    %38 = vector.shape_cast %37 : vector<8x96xf32> to vector<1x8x96xf32>
    %39 = vector.extract_strided_slice %38 {offsets = [0, 0, 0], sizes = [1, 8, 8], strides = [1, 1, 1]} : vector<1x8x96xf32> to vector<1x8x8xf32>
    %40 = vector.extract_strided_slice %38 {offsets = [0, 0, 32], sizes = [1, 8, 8], strides = [1, 1, 1]} : vector<1x8x96xf32> to vector<1x8x8xf32>
    %41 = vector.extract_strided_slice %38 {offsets = [0, 0, 64], sizes = [1, 8, 8], strides = [1, 1, 1]} : vector<1x8x96xf32> to vector<1x8x8xf32>
    %cst_15 = arith.constant 0xFF800000 : f32
    %42 = vector.broadcast %cst_15 : f32 to vector<1x8x1xf32>
    %cst_16 = arith.constant 0.000000e+00 : f32
    %43 = vector.broadcast %cst_16 : f32 to vector<1x8x1xf32>
    %cst_17 = arith.constant 0.000000e+00 : f32
    %44 = vector.broadcast %cst_17 : f32 to vector<1x8x8xf32>
    %45 = arith.truncf %39 : vector<1x8x8xf32> to vector<1x8x8xbf16>
    %46 = arith.truncf %40 : vector<1x8x8xf32> to vector<1x8x8xbf16>
    "tpu.trace_start"() <{level = 10 : i32, message = "bqd,bkd->bqk"}> : () -> ()
    %cst_18 = arith.constant dense<0.000000e+00> : vector<1x8x8xf32>
    %47 = tpu.matmul %45, %46, %cst_18 {dimension_numbers = #tpu.dot_dimension_numbers<[2], [2], [1], [1], [0, 0, 0, 1, 1, 1], [0], [0]>} : vector<1x8x8xbf16>, vector<1x8x8xbf16>, vector<1x8x8xf32> -> vector<1x8x8xf32>
    "tpu.trace_stop"() : () -> ()
    %cst_19 = arith.constant dense<0xFF800000> : vector<1x8xf32>
    %48 = vector.multi_reduction <maximumf>, %47, %cst_19 [2] : vector<1x8x8xf32> to vector<1x8xf32>
    %49 = vector.shape_cast %48 : vector<1x8xf32> to vector<1x8x1xf32>
    %50 = arith.maximumf %42, %49 : vector<1x8x1xf32>
    %51 = arith.subf %42, %50 : vector<1x8x1xf32>
    %52 = math.exp %51 : vector<1x8x1xf32>
    %53 = vector.broadcast %50 : vector<1x8x1xf32> to vector<1x8x8xf32>
    %54 = arith.subf %47, %53 : vector<1x8x8xf32>
    %55 = math.exp %54 : vector<1x8x8xf32>
    %56 = arith.mulf %52, %43 : vector<1x8x1xf32>
    %cst_20 = arith.constant dense<0.000000e+00> : vector<1x8xf32>
    %57 = vector.multi_reduction <add>, %55, %cst_20 [2] : vector<1x8x8xf32> to vector<1x8xf32>
    %58 = vector.shape_cast %57 : vector<1x8xf32> to vector<1x8x1xf32>
    %59 = arith.addf %56, %58 : vector<1x8x1xf32>
    %60 = vector.broadcast %52 : vector<1x8x1xf32> to vector<1x8x8xf32>
    %61 = arith.mulf %60, %44 : vector<1x8x8xf32>
    %62 = arith.truncf %55 : vector<1x8x8xf32> to vector<1x8x8xbf16>
    %63 = arith.truncf %41 : vector<1x8x8xf32> to vector<1x8x8xbf16>
    "tpu.trace_start"() <{level = 10 : i32, message = "bqk,bkd->bqd"}> : () -> ()
    %cst_21 = arith.constant dense<0.000000e+00> : vector<1x8x8xf32>
    %64 = tpu.matmul %62, %63, %cst_21 {dimension_numbers = #tpu.dot_dimension_numbers<[2], [1], [1], [2], [0, 0, 0, 1, 1, 2], [0], [0]>} : vector<1x8x8xbf16>, vector<1x8x8xbf16>, vector<1x8x8xf32> -> vector<1x8x8xf32>
    "tpu.trace_stop"() : () -> ()
    %65 = arith.addf %61, %64 : vector<1x8x8xf32>
    %66 = tpu.reciprocal %59 {approx = true} : vector<1x8x1xf32> -> vector<1x8x1xf32>
    %67 = vector.broadcast %66 : vector<1x8x1xf32> to vector<1x8x8xf32>
    %68 = arith.mulf %65, %67 : vector<1x8x8xf32>
    %69 = vector.shape_cast %68 : vector<1x8x8xf32> to vector<8x8xf32>
    %c0_22 = arith.constant 0 : index
    %c0_23 = arith.constant 0 : index
    %70 = vector.load %arg15[%c0_22, %c0_23] : memref<8x32xf32, #tpu.memory_space<vmem>>, vector<8x8xf32>
    tpu.vector_store %arg15[%c0_22, %c0_23], %69 {strides = array<i32>} : memref<8x32xf32, #tpu.memory_space<vmem>>, vector<8x8xf32>,
    %71 = vector.extract_strided_slice %38 {offsets = [0, 0, 8], sizes = [1, 8, 8], strides = [1, 1, 1]} : vector<1x8x96xf32> to vector<1x8x8xf32>
    %72 = vector.extract_strided_slice %38 {offsets = [0, 0, 40], sizes = [1, 8, 8], strides = [1, 1, 1]} : vector<1x8x96xf32> to vector<1x8x8xf32>
    %73 = vector.extract_strided_slice %38 {offsets = [0, 0, 72], sizes = [1, 8, 8], strides = [1, 1, 1]} : vector<1x8x96xf32> to vector<1x8x8xf32>
    %cst_24 = arith.constant 0xFF800000 : f32
    %74 = vector.broadcast %cst_24 : f32 to vector<1x8x1xf32>
    %cst_25 = arith.constant 0.000000e+00 : f32
    %75 = vector.broadcast %cst_25 : f32 to vector<1x8x1xf32>
    %cst_26 = arith.constant 0.000000e+00 : f32
    %76 = vector.broadcast %cst_26 : f32 to vector<1x8x8xf32>
    %77 = arith.truncf %71 : vector<1x8x8xf32> to vector<1x8x8xbf16>
    %78 = arith.truncf %72 : vector<1x8x8xf32> to vector<1x8x8xbf16>
    "tpu.trace_start"() <{level = 10 : i32, message = "bqd,bkd->bqk"}> : () -> ()
    %cst_27 = arith.constant dense<0.000000e+00> : vector<1x8x8xf32>
    %79 = tpu.matmul %77, %78, %cst_27 {dimension_numbers = #tpu.dot_dimension_numbers<[2], [2], [1], [1], [0, 0, 0, 1, 1, 1], [0], [0]>} : vector<1x8x8xbf16>, vector<1x8x8xbf16>, vector<1x8x8xf32> -> vector<1x8x8xf32>
    "tpu.trace_stop"() : () -> ()
    %cst_28 = arith.constant dense<0xFF800000> : vector<1x8xf32>
    %80 = vector.multi_reduction <maximumf>, %79, %cst_28 [2] : vector<1x8x8xf32> to vector<1x8xf32>
    %81 = vector.shape_cast %80 : vector<1x8xf32> to vector<1x8x1xf32>
    %82 = arith.maximumf %74, %81 : vector<1x8x1xf32>
    %83 = arith.subf %74, %82 : vector<1x8x1xf32>
    %84 = math.exp %83 : vector<1x8x1xf32>
    %85 = vector.broadcast %82 : vector<1x8x1xf32> to vector<1x8x8xf32>
    %86 = arith.subf %79, %85 : vector<1x8x8xf32>
    %87 = math.exp %86 : vector<1x8x8xf32>
    %88 = arith.mulf %84, %75 : vector<1x8x1xf32>
    %cst_29 = arith.constant dense<0.000000e+00> : vector<1x8xf32>
    %89 = vector.multi_reduction <add>, %87, %cst_29 [2] : vector<1x8x8xf32> to vector<1x8xf32>
    %90 = vector.shape_cast %89 : vector<1x8xf32> to vector<1x8x1xf32>
    %91 = arith.addf %88, %90 : vector<1x8x1xf32>
    %92 = vector.broadcast %84 : vector<1x8x1xf32> to vector<1x8x8xf32>
    %93 = arith.mulf %92, %76 : vector<1x8x8xf32>
    %94 = arith.truncf %87 : vector<1x8x8xf32> to vector<1x8x8xbf16>
    %95 = arith.truncf %73 : vector<1x8x8xf32> to vector<1x8x8xbf16>
    "tpu.trace_start"() <{level = 10 : i32, message = "bqk,bkd->bqd"}> : () -> ()
    %cst_30 = arith.constant dense<0.000000e+00> : vector<1x8x8xf32>
    %96 = tpu.matmul %94, %95, %cst_30 {dimension_numbers = #tpu.dot_dimension_numbers<[2], [1], [1], [2], [0, 0, 0, 1, 1, 2], [0], [0]>} : vector<1x8x8xbf16>, vector<1x8x8xbf16>, vector<1x8x8xf32> -> vector<1x8x8xf32>
    "tpu.trace_stop"() : () -> ()
    %97 = arith.addf %93, %96 : vector<1x8x8xf32>
    %98 = tpu.reciprocal %91 {approx = true} : vector<1x8x1xf32> -> vector<1x8x1xf32>
    %99 = vector.broadcast %98 : vector<1x8x1xf32> to vector<1x8x8xf32>
    %100 = arith.mulf %97, %99 : vector<1x8x8xf32>
    %101 = vector.shape_cast %100 : vector<1x8x8xf32> to vector<8x8xf32>
    %c0_31 = arith.constant 0 : index
    %c8 = arith.constant 8 : index
    %102 = vector.load %arg15[%c0_31, %c8] : memref<8x32xf32, #tpu.memory_space<vmem>>, vector<8x8xf32>
    tpu.vector_store %arg15[%c0_31, %c8], %101 {strides = array<i32>} : memref<8x32xf32, #tpu.memory_space<vmem>>, vector<8x8xf32>,
    %103 = vector.extract_strided_slice %38 {offsets = [0, 0, 16], sizes = [1, 8, 8], strides = [1, 1, 1]} : vector<1x8x96xf32> to vector<1x8x8xf32>
    %104 = vector.extract_strided_slice %38 {offsets = [0, 0, 48], sizes = [1, 8, 8], strides = [1, 1, 1]} : vector<1x8x96xf32> to vector<1x8x8xf32>
    %105 = vector.extract_strided_slice %38 {offsets = [0, 0, 80], sizes = [1, 8, 8], strides = [1, 1, 1]} : vector<1x8x96xf32> to vector<1x8x8xf32>
    %cst_32 = arith.constant 0xFF800000 : f32
    %106 = vector.broadcast %cst_32 : f32 to vector<1x8x1xf32>
    %cst_33 = arith.constant 0.000000e+00 : f32
    %107 = vector.broadcast %cst_33 : f32 to vector<1x8x1xf32>
    %cst_34 = arith.constant 0.000000e+00 : f32
    %108 = vector.broadcast %cst_34 : f32 to vector<1x8x8xf32>
    %109 = arith.truncf %103 : vector<1x8x8xf32> to vector<1x8x8xbf16>
    %110 = arith.truncf %104 : vector<1x8x8xf32> to vector<1x8x8xbf16>
    "tpu.trace_start"() <{level = 10 : i32, message = "bqd,bkd->bqk"}> : () -> ()
    %cst_35 = arith.constant dense<0.000000e+00> : vector<1x8x8xf32>
    %111 = tpu.matmul %109, %110, %cst_35 {dimension_numbers = #tpu.dot_dimension_numbers<[2], [2], [1], [1], [0, 0, 0, 1, 1, 1], [0], [0]>} : vector<1x8x8xbf16>, vector<1x8x8xbf16>, vector<1x8x8xf32> -> vector<1x8x8xf32>
    "tpu.trace_stop"() : () -> ()
    %cst_36 = arith.constant dense<0xFF800000> : vector<1x8xf32>
    %112 = vector.multi_reduction <maximumf>, %111, %cst_36 [2] : vector<1x8x8xf32> to vector<1x8xf32>
    %113 = vector.shape_cast %112 : vector<1x8xf32> to vector<1x8x1xf32>
    %114 = arith.maximumf %106, %113 : vector<1x8x1xf32>
    %115 = arith.subf %106, %114 : vector<1x8x1xf32>
    %116 = math.exp %115 : vector<1x8x1xf32>
    %117 = vector.broadcast %114 : vector<1x8x1xf32> to vector<1x8x8xf32>
    %118 = arith.subf %111, %117 : vector<1x8x8xf32>
    %119 = math.exp %118 : vector<1x8x8xf32>
    %120 = arith.mulf %116, %107 : vector<1x8x1xf32>
    %cst_37 = arith.constant dense<0.000000e+00> : vector<1x8xf32>
    %121 = vector.multi_reduction <add>, %119, %cst_37 [2] : vector<1x8x8xf32> to vector<1x8xf32>
    %122 = vector.shape_cast %121 : vector<1x8xf32> to vector<1x8x1xf32>
    %123 = arith.addf %120, %122 : vector<1x8x1xf32>
    %124 = vector.broadcast %116 : vector<1x8x1xf32> to vector<1x8x8xf32>
    %125 = arith.mulf %124, %108 : vector<1x8x8xf32>
    %126 = arith.truncf %119 : vector<1x8x8xf32> to vector<1x8x8xbf16>
    %127 = arith.truncf %105 : vector<1x8x8xf32> to vector<1x8x8xbf16>
    "tpu.trace_start"() <{level = 10 : i32, message = "bqk,bkd->bqd"}> : () -> ()
    %cst_38 = arith.constant dense<0.000000e+00> : vector<1x8x8xf32>
    %128 = tpu.matmul %126, %127, %cst_38 {dimension_numbers = #tpu.dot_dimension_numbers<[2], [1], [1], [2], [0, 0, 0, 1, 1, 2], [0], [0]>} : vector<1x8x8xbf16>, vector<1x8x8xbf16>, vector<1x8x8xf32> -> vector<1x8x8xf32>
    "tpu.trace_stop"() : () -> ()
    %129 = arith.addf %125, %128 : vector<1x8x8xf32>
    %130 = tpu.reciprocal %123 {approx = true} : vector<1x8x1xf32> -> vector<1x8x1xf32>
    %131 = vector.broadcast %130 : vector<1x8x1xf32> to vector<1x8x8xf32>
    %132 = arith.mulf %129, %131 : vector<1x8x8xf32>
    %133 = vector.shape_cast %132 : vector<1x8x8xf32> to vector<8x8xf32>
    %c0_39 = arith.constant 0 : index
    %c16 = arith.constant 16 : index
    %134 = vector.load %arg15[%c0_39, %c16] : memref<8x32xf32, #tpu.memory_space<vmem>>, vector<8x8xf32>
    tpu.vector_store %arg15[%c0_39, %c16], %133 {strides = array<i32>} : memref<8x32xf32, #tpu.memory_space<vmem>>, vector<8x8xf32>,
    %135 = vector.extract_strided_slice %38 {offsets = [0, 0, 24], sizes = [1, 8, 8], strides = [1, 1, 1]} : vector<1x8x96xf32> to vector<1x8x8xf32>
    %136 = vector.extract_strided_slice %38 {offsets = [0, 0, 56], sizes = [1, 8, 8], strides = [1, 1, 1]} : vector<1x8x96xf32> to vector<1x8x8xf32>
    %137 = vector.extract_strided_slice %38 {offsets = [0, 0, 88], sizes = [1, 8, 8], strides = [1, 1, 1]} : vector<1x8x96xf32> to vector<1x8x8xf32>
    %cst_40 = arith.constant 0xFF800000 : f32
    %138 = vector.broadcast %cst_40 : f32 to vector<1x8x1xf32>
    %cst_41 = arith.constant 0.000000e+00 : f32
    %139 = vector.broadcast %cst_41 : f32 to vector<1x8x1xf32>
    %cst_42 = arith.constant 0.000000e+00 : f32
    %140 = vector.broadcast %cst_42 : f32 to vector<1x8x8xf32>
    %141 = arith.truncf %135 : vector<1x8x8xf32> to vector<1x8x8xbf16>
    %142 = arith.truncf %136 : vector<1x8x8xf32> to vector<1x8x8xbf16>
    "tpu.trace_start"() <{level = 10 : i32, message = "bqd,bkd->bqk"}> : () -> ()
    %cst_43 = arith.constant dense<0.000000e+00> : vector<1x8x8xf32>
    %143 = tpu.matmul %141, %142, %cst_43 {dimension_numbers = #tpu.dot_dimension_numbers<[2], [2], [1], [1], [0, 0, 0, 1, 1, 1], [0], [0]>} : vector<1x8x8xbf16>, vector<1x8x8xbf16>, vector<1x8x8xf32> -> vector<1x8x8xf32>
    "tpu.trace_stop"() : () -> ()
    %cst_44 = arith.constant dense<0xFF800000> : vector<1x8xf32>
    %144 = vector.multi_reduction <maximumf>, %143, %cst_44 [2] : vector<1x8x8xf32> to vector<1x8xf32>
    %145 = vector.shape_cast %144 : vector<1x8xf32> to vector<1x8x1xf32>
    %146 = arith.maximumf %138, %145 : vector<1x8x1xf32>
    %147 = arith.subf %138, %146 : vector<1x8x1xf32>
    %148 = math.exp %147 : vector<1x8x1xf32>
    %149 = vector.broadcast %146 : vector<1x8x1xf32> to vector<1x8x8xf32>
    %150 = arith.subf %143, %149 : vector<1x8x8xf32>
    %151 = math.exp %150 : vector<1x8x8xf32>
    %152 = arith.mulf %148, %139 : vector<1x8x1xf32>
    %cst_45 = arith.constant dense<0.000000e+00> : vector<1x8xf32>
    %153 = vector.multi_reduction <add>, %151, %cst_45 [2] : vector<1x8x8xf32> to vector<1x8xf32>
    %154 = vector.shape_cast %153 : vector<1x8xf32> to vector<1x8x1xf32>
    %155 = arith.addf %152, %154 : vector<1x8x1xf32>
    %156 = vector.broadcast %148 : vector<1x8x1xf32> to vector<1x8x8xf32>
    %157 = arith.mulf %156, %140 : vector<1x8x8xf32>
    %158 = arith.truncf %151 : vector<1x8x8xf32> to vector<1x8x8xbf16>
    %159 = arith.truncf %137 : vector<1x8x8xf32> to vector<1x8x8xbf16>
    "tpu.trace_start"() <{level = 10 : i32, message = "bqk,bkd->bqd"}> : () -> ()
    %cst_46 = arith.constant dense<0.000000e+00> : vector<1x8x8xf32>
    %160 = tpu.matmul %158, %159, %cst_46 {dimension_numbers = #tpu.dot_dimension_numbers<[2], [1], [1], [2], [0, 0, 0, 1, 1, 2], [0], [0]>} : vector<1x8x8xbf16>, vector<1x8x8xbf16>, vector<1x8x8xf32> -> vector<1x8x8xf32>
    "tpu.trace_stop"() : () -> ()
    %161 = arith.addf %157, %160 : vector<1x8x8xf32>
    %162 = tpu.reciprocal %155 {approx = true} : vector<1x8x1xf32> -> vector<1x8x1xf32>
    %163 = vector.broadcast %162 : vector<1x8x1xf32> to vector<1x8x8xf32>
    %164 = arith.mulf %161, %163 : vector<1x8x8xf32>
    %165 = vector.shape_cast %164 : vector<1x8x8xf32> to vector<8x8xf32>
    %c0_47 = arith.constant 0 : index
    %c24 = arith.constant 24 : index
    %166 = vector.load %arg15[%c0_47, %c24] : memref<8x32xf32, #tpu.memory_space<vmem>>, vector<8x8xf32>
    tpu.vector_store %arg15[%c0_47, %c24], %165 {strides = array<i32>} : memref<8x32xf32, #tpu.memory_space<vmem>>, vector<8x8xf32>,
    %c0_48 = arith.constant 0 : index
    %c0_49 = arith.constant 0 : index
    %167 = vector.load %arg15[%c0_48, %c0_49] : memref<8x32xf32, #tpu.memory_space<vmem>>, vector<8x32xf32>
    %168 = arith.truncf %167 : vector<8x32xf32> to vector<8x32xbf16>
    %c0_50 = arith.constant 0 : index
    %c0_51 = arith.constant 0 : index
    %169 = vector.load %arg6[%c0_50, %c0_51] : memref<32x32xbf16, #tpu.memory_space<vmem>>, vector<32x32xbf16>
    %cst_52 = arith.constant dense<0.000000e+00> : vector<8x32xf32>
    %170 = tpu.matmul %168, %169, %cst_52 {dimension_numbers = #tpu.dot_dimension_numbers<[1], [0], [0], [1], [0, 0, 1, 1], [], []>} : vector<8x32xbf16>, vector<32x32xbf16>, vector<8x32xf32> -> vector<8x32xf32>
    %c0_53 = arith.constant 0 : index
    %c0_54 = arith.constant 0 : index
    %171 = vector.load %arg7[%c0_53, %c0_54] : memref<1x32xf32, #tpu.memory_space<vmem>>, vector<1x32xf32>
    %172 = vector.shape_cast %171 : vector<1x32xf32> to vector<32xf32>
    %173 = vector.shape_cast %172 : vector<32xf32> to vector<1x32xf32>
    %174 = vector.broadcast %173 : vector<1x32xf32> to vector<8x32xf32>
    %175 = arith.addf %170, %174 : vector<8x32xf32>
    %176 = arith.addf %175, %1 : vector<8x32xf32>
    %c0_55 = arith.constant 0 : index
    %c0_56 = arith.constant 0 : index
    %177 = vector.load %arg8[%c0_55, %c0_56] : memref<1x32xf32, #tpu.memory_space<vmem>>, vector<1x32xf32>
    %178 = vector.shape_cast %177 : vector<1x32xf32> to vector<32xf32>
    %c0_57 = arith.constant 0 : index
    %c0_58 = arith.constant 0 : index
    %179 = vector.load %arg9[%c0_57, %c0_58] : memref<1x32xf32, #tpu.memory_space<vmem>>, vector<1x32xf32>
    %180 = vector.shape_cast %179 : vector<1x32xf32> to vector<32xf32>
    %cst_59 = arith.constant dense<0.000000e+00> : vector<8xf32>
    %181 = vector.multi_reduction <add>, %176, %cst_59 [1] : vector<8x32xf32> to vector<8xf32>
    %182 = vector.shape_cast %181 : vector<8xf32> to vector<8x1xf32>
    %cst_60 = arith.constant 3.200000e+01 : f32
    %183 = vector.broadcast %cst_60 : f32 to vector<8x1xf32>
    %184 = arith.divf %182, %183 : vector<8x1xf32>
    %185 = arith.mulf %176, %176 : vector<8x32xf32>
    %cst_61 = arith.constant dense<0.000000e+00> : vector<8xf32>
    %186 = vector.multi_reduction <add>, %185, %cst_61 [1] : vector<8x32xf32> to vector<8xf32>
    %187 = vector.shape_cast %186 : vector<8xf32> to vector<8x1xf32>
    %cst_62 = arith.constant 3.200000e+01 : f32
    %188 = vector.broadcast %cst_62 : f32 to vector<8x1xf32>
    %189 = arith.divf %187, %188 : vector<8x1xf32>
    %190 = arith.mulf %184, %184 : vector<8x1xf32>
    %191 = arith.subf %189, %190 : vector<8x1xf32>
    %192 = vector.broadcast %184 : vector<8x1xf32> to vector<8x32xf32>
    %193 = arith.subf %176, %192 : vector<8x32xf32>
    %cst_63 = arith.constant 9.99999974E-6 : f32
    %194 = vector.broadcast %cst_63 : f32 to vector<8x1xf32>
    %195 = arith.addf %191, %194 : vector<8x1xf32>
    %196 = math.rsqrt %195 : vector<8x1xf32>
    %197 = vector.broadcast %196 : vector<8x1xf32> to vector<8x32xf32>
    %198 = arith.mulf %193, %197 : vector<8x32xf32>
    %199 = vector.shape_cast %178 : vector<32xf32> to vector<1x32xf32>
    %200 = vector.broadcast %199 : vector<1x32xf32> to vector<8x32xf32>
    %201 = arith.mulf %198, %200 : vector<8x32xf32>
    %202 = vector.shape_cast %180 : vector<32xf32> to vector<1x32xf32>
    %203 = vector.broadcast %202 : vector<1x32xf32> to vector<8x32xf32>
    %204 = arith.addf %201, %203 : vector<8x32xf32>
    %205 = arith.truncf %204 : vector<8x32xf32> to vector<8x32xbf16>
    %c0_64 = arith.constant 0 : index
    %c0_65 = arith.constant 0 : index
    %206 = vector.load %arg10[%c0_64, %c0_65] : memref<32x64xbf16, #tpu.memory_space<vmem>>, vector<32x64xbf16>
    %cst_66 = arith.constant dense<0.000000e+00> : vector<8x64xf32>
    %207 = tpu.matmul %205, %206, %cst_66 {dimension_numbers = #tpu.dot_dimension_numbers<[1], [0], [0], [1], [0, 0, 1, 1], [], []>} : vector<8x32xbf16>, vector<32x64xbf16>, vector<8x64xf32> -> vector<8x64xf32>
    %c0_67 = arith.constant 0 : index
    %c0_68 = arith.constant 0 : index
    %208 = vector.load %arg11[%c0_67, %c0_68] : memref<1x64xf32, #tpu.memory_space<vmem>>, vector<1x64xf32>
    %209 = vector.shape_cast %208 : vector<1x64xf32> to vector<64xf32>
    %210 = vector.shape_cast %209 : vector<64xf32> to vector<1x64xf32>
    %211 = vector.broadcast %210 : vector<1x64xf32> to vector<8x64xf32>
    %212 = arith.addf %207, %211 : vector<8x64xf32>
    %cst_69 = arith.constant 5.000000e-01 : f32
    %213 = vector.broadcast %cst_69 : f32 to vector<8x64xf32>
    %214 = arith.mulf %213, %212 : vector<8x64xf32>
    %cst_70 = arith.constant 2.000000e+00 : f32
    %215 = math.sqrt %cst_70 : f32
    %216 = vector.broadcast %215 : f32 to vector<8x64xf32>
    %217 = arith.divf %212, %216 : vector<8x64xf32>
    %218 = math.erf %217 : vector<8x64xf32>
    %cst_71 = arith.constant 1.000000e+00 : f32
    %219 = vector.broadcast %cst_71 : f32 to vector<8x64xf32>
    %220 = arith.addf %219, %218 : vector<8x64xf32>
    %221 = arith.mulf %214, %220 : vector<8x64xf32>
    %222 = arith.truncf %221 : vector<8x64xf32> to vector<8x64xbf16>
    %c0_72 = arith.constant 0 : index
    %c0_73 = arith.constant 0 : index
    %223 = vector.load %arg12[%c0_72, %c0_73] : memref<64x32xbf16, #tpu.memory_space<vmem>>, vector<64x32xbf16>
    %cst_74 = arith.constant dense<0.000000e+00> : vector<8x32xf32>
    %224 = tpu.matmul %222, %223, %cst_74 {dimension_numbers = #tpu.dot_dimension_numbers<[1], [0], [0], [1], [0, 0, 1, 1], [], []>} : vector<8x64xbf16>, vector<64x32xbf16>, vector<8x32xf32> -> vector<8x32xf32>
    %c0_75 = arith.constant 0 : index
    %c0_76 = arith.constant 0 : index
    %225 = vector.load %arg13[%c0_75, %c0_76] : memref<1x32xf32, #tpu.memory_space<vmem>>, vector<1x32xf32>
    %226 = vector.shape_cast %225 : vector<1x32xf32> to vector<32xf32>
    %227 = vector.shape_cast %226 : vector<32xf32> to vector<1x32xf32>
    %228 = vector.broadcast %227 : vector<1x32xf32> to vector<8x32xf32>
    %229 = arith.addf %224, %228 : vector<8x32xf32>
    %230 = arith.addf %229, %176 : vector<8x32xf32>
    %231 = vector.shape_cast %230 : vector<8x32xf32> to vector<1x8x32xf32>
    %c0_77 = arith.constant 0 : index
    %c0_78 = arith.constant 0 : index
    %c0_79 = arith.constant 0 : index
    %232 = vector.load %arg14[%c0_77, %c0_78, %c0_79] : memref<1x8x32xf32, #tpu.memory_space<vmem>>, vector<1x8x32xf32>
    tpu.vector_store %arg14[%c0_77, %c0_78, %c0_79], %231 {strides = array<i32>} : memref<1x8x32xf32, #tpu.memory_space<vmem>>, vector<1x8x32xf32>,
    return
  }
  func.func @transform_0(%arg0: i32) -> (i32, i32, i32) {
    %c0_i32 = arith.constant 0 : i32
    %c0_i32_0 = arith.constant 0 : i32
    %c0_i32_1 = arith.constant 0 : i32
    return %arg0, %c0_i32, %c0_i32_0 : i32, i32, i32
  }
  func.func @transform_1(%arg0: i32) -> (i32, i32) {
    %c0_i32 = arith.constant 0 : i32
    %c0_i32_0 = arith.constant 0 : i32
    %c0_i32_1 = arith.constant 0 : i32
    return %c0_i32, %c0_i32_0 : i32, i32
  }
  func.func @transform_2(%arg0: i32) -> (i32, i32) {
    %c0_i32 = arith.constant 0 : i32
    %c0_i32_0 = arith.constant 0 : i32
    %c0_i32_1 = arith.constant 0 : i32
    return %c0_i32, %c0_i32_0 : i32, i32
  }
  func.func @transform_3(%arg0: i32) -> (i32, i32) {
    %c0_i32 = arith.constant 0 : i32
    %c0_i32_0 = arith.constant 0 : i32
    %c0_i32_1 = arith.constant 0 : i32
    return %c0_i32, %c0_i32_0 : i32, i32
  }
  func.func @transform_4(%arg0: i32) -> (i32, i32) {
    %c0_i32 = arith.constant 0 : i32
    %c0_i32_0 = arith.constant 0 : i32
    %c0_i32_1 = arith.constant 0 : i32
    return %c0_i32, %c0_i32_0 : i32, i32
  }
  func.func @transform_5(%arg0: i32) -> (i32, i32) {
    %c0_i32 = arith.constant 0 : i32
    %c0_i32_0 = arith.constant 0 : i32
    %c0_i32_1 = arith.constant 0 : i32
    return %c0_i32, %c0_i32_0 : i32, i32
  }
  func.func @transform_6(%arg0: i32) -> (i32, i32) {
    %c0_i32 = arith.constant 0 : i32
    %c0_i32_0 = arith.constant 0 : i32
    %c0_i32_1 = arith.constant 0 : i32
    return %c0_i32, %c0_i32_0 : i32, i32
  }
  func.func @transform_7(%arg0: i32) -> (i32, i32) {
    %c0_i32 = arith.constant 0 : i32
    %c0_i32_0 = arith.constant 0 : i32
    %c0_i32_1 = arith.constant 0 : i32
    return %c0_i32, %c0_i32_0 : i32, i32
  }
  func.func @transform_8(%arg0: i32) -> (i32, i32) {
    %c0_i32 = arith.constant 0 : i32
    %c0_i32_0 = arith.constant 0 : i32
    %c0_i32_1 = arith.constant 0 : i32
    return %c0_i32, %c0_i32_0 : i32, i32
  }
  func.func @transform_9(%arg0: i32) -> (i32, i32) {
    %c0_i32 = arith.constant 0 : i32
    %c0_i32_0 = arith.constant 0 : i32
    %c0_i32_1 = arith.constant 0 : i32
    return %c0_i32, %c0_i32_0 : i32, i32
  }
  func.func @transform_10(%arg0: i32) -> (i32, i32) {
    %c0_i32 = arith.constant 0 : i32
    %c0_i32_0 = arith.constant 0 : i32
    %c0_i32_1 = arith.constant 0 : i32
    return %c0_i32, %c0_i32_0 : i32, i32
  }
  func.func @transform_11(%arg0: i32) -> (i32, i32) {
    %c0_i32 = arith.constant 0 : i32
    %c0_i32_0 = arith.constant 0 : i32
    %c0_i32_1 = arith.constant 0 : i32
    return %c0_i32, %c0_i32_0 : i32, i32
  }
  func.func @transform_12(%arg0: i32) -> (i32, i32) {
    %c0_i32 = arith.constant 0 : i32
    %c0_i32_0 = arith.constant 0 : i32
    %c0_i32_1 = arith.constant 0 : i32
    return %c0_i32, %c0_i32_0 : i32, i32
  }
  func.func @transform_13(%arg0: i32) -> (i32, i32, i32) {
    %c0_i32 = arith.constant 0 : i32
    %c0_i32_0 = arith.constant 0 : i32
    %c0_i32_1 = arith.constant 0 : i32
    return %arg0, %c0_i32, %c0_i32_0 : i32, i32, i32
  }
}

</mosaic_0001>

<llo_original>
// kernel: tpu_custom_call.1
$region0: #{tpu_custom_call.1}
  #allocation0 [shape = 'u32[]', space=smem, size = 0x4, offset = 0x4, fixed_abs, tag = 'smem constant byte address 0x4 - core index']
  #allocation1 [shape = 'u32[144,128]{1,0:T(1,128)}', space=vmem, size = 0x12000, scoped, tag = 'internal scratch']
  #allocation2 [shape = 'f32[8,32]{1,0:T(8,128)}', space=vmem, size = 0x1000, scoped, tag = 'scratch operand']
  %s0 = inlined_call_operand.vmem [shape: f32[2,8,32], index: 0, kind: input, shape index: {}]
  %s1 = inlined_call_operand.vmem [shape: f32[1,32], index: 1, kind: input, shape index: {}]
  %s2 = inlined_call_operand.vmem [shape: f32[1,32], index: 2, kind: input, shape index: {}]
  %s3 = inlined_call_operand.vmem [shape: bf16[32,96], index: 3, kind: input, shape index: {}]
  %s4 = inlined_call_operand.hbm [shape: f32[1,96], index: 4, kind: input, shape index: {}]
  %s5 = inlined_call_operand.vmem [shape: bf16[32,32], index: 5, kind: input, shape index: {}]
  %s6 = inlined_call_operand.hbm [shape: f32[1,32], index: 6, kind: input, shape index: {}]
  %s7 = inlined_call_operand.hbm [shape: f32[1,32], index: 7, kind: input, shape index: {}]
  %s8 = inlined_call_operand.hbm [shape: f32[1,32], index: 8, kind: input, shape index: {}]
  %s9 = inlined_call_operand.vmem [shape: bf16[32,64], index: 9, kind: input, shape index: {}]
  %s10 = inlined_call_operand.vmem [shape: f32[1,64], index: 10, kind: input, shape index: {}]
  %s11 = inlined_call_operand.vmem [shape: bf16[64,32], index: 11, kind: input, shape index: {}]
  %s12 = inlined_call_operand.vmem [shape: f32[1,32], index: 12, kind: input, shape index: {}]
  %s13 = inlined_call_operand.hbm [shape: f32[2,8,32], index: 13, kind: output, shape index: {}]
  %s14 = sld [smem:[#allocation0]]
  $region101: #{tpu_custom_call.1} parent=0
    _
  %s16 = ssub.s32 1, %s14
  %s17 = scalar_select 0, %s16, %s14
  $region1: #{tpu_custom_call.1} parent=0
    #allocation3 [shape = 'u8[512]{0}', space=vmem, size = 0x400, scoped, tag = 'input window, operand 4, single buffered']
    #allocation4 [shape = 's32[2]{0}', space=sflag, size = 0x8, scoped, tag = 'scoped memory for tpu_custom_call.1']
    #allocation5 [shape = 's32[2]{0}', space=sflag, size = 0x8, scoped, tag = 'scoped memory for tpu_custom_call.1']
    #allocation6 [shape = 'u8[512]{0}', space=vmem, size = 0x400, scoped, tag = 'input window, operand 6, single buffered']
    #allocation7 [shape = 's32[1]{0}', space=sflag, size = 0x4, scoped, tag = 'scoped memory for tpu_custom_call.1']
    #allocation8 [shape = 'u8[512]{0}', space=vmem, size = 0x400, scoped, tag = 'input window, operand 7, single buffered']
    #allocation9 [shape = 'u8[512]{0}', space=vmem, size = 0x400, scoped, tag = 'input window, operand 8, single buffered']
    #allocation10 [shape = 's32[1]{0}', space=sflag, size = 0x4, scoped, tag = 'scoped memory for tpu_custom_call.1']
    #allocation11 [shape = 'u8[8192]{0}', space=vmem, size = 0x2000, scoped, tag = 'output window, operand 0']
    %18 = vsyncpa [#allocation4], 0
    %19 = vsyncpa [#allocation7], 0
    %20 = vsyncpa [#allocation10], 0
    %21 = vsyncpa [#allocation5], 0
    %s22 = scalar_lea.sflag [#allocation5], 1
    %23 = vsyncpa %s22, 0
    loop: start=0, step=1, limit=4
    $region2: #{tpu_custom_call.1} parent=1 // loop_pre_header
      _
    $region3: #{tpu_custom_call.1} parent=1 // loop_header
      %s25 = sphi 0, %s29
      %p26 = scmp.ge.s32.totalorder %s25, 4
      %s35 = sphi 0, %s37
      %s38 = sphi 0, %s35
      %s39 = sphi 0, %s38
      %s55 = sphi 0, %s39
      %s59 = sphi 0, %s59
      %s61 = sphi 0, %s59
      %s62 = sphi 0, %s61
      %s76 = sphi 0, %s62
      %s80 = sphi 0, %s80
      %s82 = sphi 0, %s80
      %s83 = sphi 0, %s82
      %s97 = sphi 0, %s83
      %s101 = sphi 0, %s101
      %s103 = sphi 0, %s101
      %s104 = sphi 0, %s103
      %s118 = sphi 0, %s104
      %s122 = sphi 0, %s122
      %s124 = sphi 0, %s122
      %s125 = sphi 0, %s124
      %s139 = sphi 0, %s125
      %s143 = sphi 0, %s143
      %s145 = sphi 0, %s143
      %s146 = sphi 0, %s145
      %s160 = sphi 0, %s146
      %s164 = sphi 0, %s164
      %s166 = sphi 0, %s164
      %s167 = sphi 0, %s166
      %s181 = sphi 0, %s167
      %s185 = sphi 0, %s185
      %s187 = sphi 0, %s185
      %s188 = sphi 0, %s187
      %s202 = sphi 0, %s188
      %s206 = sphi 0, %s206
      %s208 = sphi 0, %s206
      %s209 = sphi 0, %s208
      %s223 = sphi 0, %s209
      %s227 = sphi 0, %s227
      %s229 = sphi 0, %s227
      %s230 = sphi 0, %s229
      %s244 = sphi 0, %s230
      %s248 = sphi 0, %s248
      %s250 = sphi 0, %s248
      %s251 = sphi 0, %s250
      %s265 = sphi 0, %s251
      %s269 = sphi 0, %s269
      %s271 = sphi 0, %s269
      %s272 = sphi 0, %s271
      %s286 = sphi 0, %s272
      %s290 = sphi 0, %s290
      %s292 = sphi 0, %s290
      %s293 = sphi 0, %s292
      %s307 = sphi 0, %s293
      %s313 = sphi 0, %s315
      %s316 = sphi 0, %s313
      %s317 = sphi 0, %s316
      %s333 = sphi 0, %s317
    $region4: #{tpu_custom_call.1} parent=1 // loop_header_branch
      %28 = sbr.rel (%p26) target = $region8
    $region5: #{tpu_custom_call.1} parent=1 // loop_body
      %s30 = ssub.s32 %s25, 1
      %s31 = ssub.s32 %s25, 2
      %s32 = sadd.s32 %s25, 1
      %s33 = ssub.s32 %s25, %s32
      %p34 = scmp.eq.s32.totalorder %s33, 0
      %s36 = sadd.s32 %s35, 1
      %s37 = scalar_select %p34, %s35, %s36
      %p40 = pneg %p34
      %p41 = scmp.eq.s32.totalorder %s25, 1
      %p42 = por %p40, %p41
      %p43 = scmp.ne.s32.totalorder %s35, %s38
      %p44 = scmp.eq.s32.totalorder %s25, 0
      %p45 = por %p43, %p44
      %p46 = scmp.ne.s32.totalorder %s35, %s38
      %p47 = scmp.eq.s32.totalorder %s30, 1
      %p48 = por %p46, %p47
      %p49 = scmp.ne.s32.totalorder %s38, %s39
      %p50 = scmp.eq.s32.totalorder %s30, 0
      %p51 = por %p49, %p50
      %p52 = scmp.ne.s32.totalorder %s38, %s39
      %p53 = scmp.eq.s32.totalorder %s31, 1
      %p54 = por %p52, %p53
      %p56 = scmp.ne.s32.totalorder %s39, %s55
      %p57 = scmp.eq.s32.totalorder %s31, 0
      %p58 = por %p56, %p57
      %s60 = sadd.s32 %s59, 1
      %p63 = scmp.eq.s32.totalorder %s25, 1
      %p64 = scmp.ne.s32.totalorder %s59, %s61
      %p65 = scmp.eq.s32.totalorder %s25, 0
      %p66 = por %p64, %p65
      %p67 = scmp.ne.s32.totalorder %s59, %s61
      %p68 = scmp.eq.s32.totalorder %s30, 1
      %p69 = por %p67, %p68
      %p70 = scmp.ne.s32.totalorder %s61, %s62
      %p71 = scmp.eq.s32.totalorder %s30, 0
      %p72 = por %p70, %p71
      %p73 = scmp.ne.s32.totalorder %s61, %s62
      %p74 = scmp.eq.s32.totalorder %s31, 1
      %p75 = por %p73, %p74
      %p77 = scmp.ne.s32.totalorder %s62, %s76
      %p78 = scmp.eq.s32.totalorder %s31, 0
      %p79 = por %p77, %p78
      %s81 = sadd.s32 %s80, 1
      %p84 = scmp.eq.s32.totalorder %s25, 1
      %p85 = scmp.ne.s32.totalorder %s80, %s82
      %p86 = scmp.eq.s32.totalorder %s25, 0
      %p87 = por %p85, %p86
      %p88 = scmp.ne.s32.totalorder %s80, %s82
      %p89 = scmp.eq.s32.totalorder %s30, 1
      %p90 = por %p88, %p89
      %p91 = scmp.ne.s32.totalorder %s82, %s83
      %p92 = scmp.eq.s32.totalorder %s30, 0
      %p93 = por %p91, %p92
      %p94 = scmp.ne.s32.totalorder %s82, %s83
      %p95 = scmp.eq.s32.totalorder %s31, 1
      %p96 = por %p94, %p95
      %p98 = scmp.ne.s32.totalorder %s83, %s97
      %p99 = scmp.eq.s32.totalorder %s31, 0
      %p100 = por %p98, %p99
      %s102 = sadd.s32 %s101, 1
      %p105 = scmp.eq.s32.totalorder %s25, 1
      %p106 = scmp.ne.s32.totalorder %s101, %s103
      %p107 = scmp.eq.s32.totalorder %s25, 0
      %p108 = por %p106, %p107
      %p109 = scmp.ne.s32.totalorder %s101, %s103
      %p110 = scmp.eq.s32.totalorder %s30, 1
      %p111 = por %p109, %p110
      %p112 = scmp.ne.s32.totalorder %s103, %s104
      %p113 = scmp.eq.s32.totalorder %s30, 0
      %p114 = por %p112, %p113
      %p115 = scmp.ne.s32.totalorder %s103, %s104
      %p116 = scmp.eq.s32.totalorder %s31, 1
      %p117 = por %p115, %p116
      %p119 = scmp.ne.s32.totalorder %s104, %s118
      %p120 = scmp.eq.s32.totalorder %s31, 0
      %p121 = por %p119, %p120
      %s123 = sadd.s32 %s122, 1
      %p126 = scmp.eq.s32.totalorder %s25, 1
      %p127 = scmp.ne.s32.totalorder %s122, %s124
      %p128 = scmp.eq.s32.totalorder %s25, 0
      %p129 = por %p127, %p128
      %p130 = scmp.ne.s32.totalorder %s122, %s124
      %p131 = scmp.eq.s32.totalorder %s30, 1
      %p132 = por %p130, %p131
      %p133 = scmp.ne.s32.totalorder %s124, %s125
      %p134 = scmp.eq.s32.totalorder %s30, 0
      %p135 = por %p133, %p134
      %p136 = scmp.ne.s32.totalorder %s124, %s125
      %p137 = scmp.eq.s32.totalorder %s31, 1
      %p138 = por %p136, %p137
      %p140 = scmp.ne.s32.totalorder %s125, %s139
      %p141 = scmp.eq.s32.totalorder %s31, 0
      %p142 = por %p140, %p141
      %s144 = sadd.s32 %s143, 1
      %p147 = scmp.eq.s32.totalorder %s25, 1
      %p148 = scmp.ne.s32.totalorder %s143, %s145
      %p149 = scmp.eq.s32.totalorder %s25, 0
      %p150 = por %p148, %p149
      %p151 = scmp.ne.s32.totalorder %s143, %s145
      %p152 = scmp.eq.s32.totalorder %s30, 1
      %p153 = por %p151, %p152
      %p154 = scmp.ne.s32.totalorder %s145, %s146
      %p155 = scmp.eq.s32.totalorder %s30, 0
      %p156 = por %p154, %p155
      %p157 = scmp.ne.s32.totalorder %s145, %s146
      %p158 = scmp.eq.s32.totalorder %s31, 1
      %p159 = por %p157, %p158
      %p161 = scmp.ne.s32.totalorder %s146, %s160
      %p162 = scmp.eq.s32.totalorder %s31, 0
      %p163 = por %p161, %p162
      %s165 = sadd.s32 %s164, 1
      %p168 = scmp.eq.s32.totalorder %s25, 1
      %p169 = scmp.ne.s32.totalorder %s164, %s166
      %p170 = scmp.eq.s32.totalorder %s25, 0
      %p171 = por %p169, %p170
      %p172 = scmp.ne.s32.totalorder %s164, %s166
      %p173 = scmp.eq.s32.totalorder %s30, 1
      %p174 = por %p172, %p173
      %p175 = scmp.ne.s32.totalorder %s166, %s167
      %p176 = scmp.eq.s32.totalorder %s30, 0
      %p177 = por %p175, %p176
      %p178 = scmp.ne.s32.totalorder %s166, %s167
      %p179 = scmp.eq.s32.totalorder %s31, 1
      %p180 = por %p178, %p179
      %p182 = scmp.ne.s32.totalorder %s167, %s181
      %p183 = scmp.eq.s32.totalorder %s31, 0
      %p184 = por %p182, %p183
      %s186 = sadd.s32 %s185, 1
      %p189 = scmp.eq.s32.totalorder %s25, 1
      %p190 = scmp.ne.s32.totalorder %s185, %s187
      %p191 = scmp.eq.s32.totalorder %s25, 0
      %p192 = por %p190, %p191
      %p193 = scmp.ne.s32.totalorder %s185, %s187
      %p194 = scmp.eq.s32.totalorder %s30, 1
      %p195 = por %p193, %p194
      %p196 = scmp.ne.s32.totalorder %s187, %s188
      %p197 = scmp.eq.s32.totalorder %s30, 0
      %p198 = por %p196, %p197
      %p199 = scmp.ne.s32.totalorder %s187, %s188
      %p200 = scmp.eq.s32.totalorder %s31, 1
      %p201 = por %p199, %p200
      %p203 = scmp.ne.s32.totalorder %s188, %s202
      %p204 = scmp.eq.s32.totalorder %s31, 0
      %p205 = por %p203, %p204
      %s207 = sadd.s32 %s206, 1
      %p210 = scmp.eq.s32.totalorder %s25, 1
      %p211 = scmp.ne.s32.totalorder %s206, %s208
      %p212 = scmp.eq.s32.totalorder %s25, 0
      %p213 = por %p211, %p212
      %p214 = scmp.ne.s32.totalorder %s206, %s208
      %p215 = scmp.eq.s32.totalorder %s30, 1
      %p216 = por %p214, %p215
      %p217 = scmp.ne.s32.totalorder %s208, %s209
      %p218 = scmp.eq.s32.totalorder %s30, 0
      %p219 = por %p217, %p218
      %p220 = scmp.ne.s32.totalorder %s208, %s209
      %p221 = scmp.eq.s32.totalorder %s31, 1
      %p222 = por %p220, %p221
      %p224 = scmp.ne.s32.totalorder %s209, %s223
      %p225 = scmp.eq.s32.totalorder %s31, 0
      %p226 = por %p224, %p225
      %s228 = sadd.s32 %s227, 1
      %p231 = scmp.eq.s32.totalorder %s25, 1
      %p232 = scmp.ne.s32.totalorder %s227, %s229
      %p233 = scmp.eq.s32.totalorder %s25, 0
      %p234 = por %p232, %p233
      %p235 = scmp.ne.s32.totalorder %s227, %s229
      %p236 = scmp.eq.s32.totalorder %s30, 1
      %p237 = por %p235, %p236
      %p238 = scmp.ne.s32.totalorder %s229, %s230
      %p239 = scmp.eq.s32.totalorder %s30, 0
      %p240 = por %p238, %p239
      %p241 = scmp.ne.s32.totalorder %s229, %s230
      %p242 = scmp.eq.s32.totalorder %s31, 1
      %p243 = por %p241, %p242
      %p245 = scmp.ne.s32.totalorder %s230, %s244
      %p246 = scmp.eq.s32.totalorder %s31, 0
      %p247 = por %p245, %p246
      %s249 = sadd.s32 %s248, 1
      %p252 = scmp.eq.s32.totalorder %s25, 1
      %p253 = scmp.ne.s32.totalorder %s248, %s250
      %p254 = scmp.eq.s32.totalorder %s25, 0
      %p255 = por %p253, %p254
      %p256 = scmp.ne.s32.totalorder %s248, %s250
      %p257 = scmp.eq.s32.totalorder %s30, 1
      %p258 = por %p256, %p257
      %p259 = scmp.ne.s32.totalorder %s250, %s251
      %p260 = scmp.eq.s32.totalorder %s30, 0
      %p261 = por %p259, %p260
      %p262 = scmp.ne.s32.totalorder %s250, %s251
      %p263 = scmp.eq.s32.totalorder %s31, 1
      %p264 = por %p262, %p263
      %p266 = scmp.ne.s32.totalorder %s251, %s265
      %p267 = scmp.eq.s32.totalorder %s31, 0
      %p268 = por %p266, %p267
      %s270 = sadd.s32 %s269, 1
      %p273 = scmp.eq.s32.totalorder %s25, 1
      %p274 = scmp.ne.s32.totalorder %s269, %s271
      %p275 = scmp.eq.s32.totalorder %s25, 0
      %p276 = por %p274, %p275
      %p277 = scmp.ne.s32.totalorder %s269, %s271
      %p278 = scmp.eq.s32.totalorder %s30, 1
      %p279 = por %p277, %p278
      %p280 = scmp.ne.s32.totalorder %s271, %s272
      %p281 = scmp.eq.s32.totalorder %s30, 0
      %p282 = por %p280, %p281
      %p283 = scmp.ne.s32.totalorder %s271, %s272
      %p284 = scmp.eq.s32.totalorder %s31, 1
      %p285 = por %p283, %p284
      %p287 = scmp.ne.s32.totalorder %s272, %s286
      %p288 = scmp.eq.s32.totalorder %s31, 0
      %p289 = por %p287, %p288
      %s291 = sadd.s32 %s290, 1
      %p294 = scmp.eq.s32.totalorder %s25, 1
      %p295 = scmp.ne.s32.totalorder %s290, %s292
      %p296 = scmp.eq.s32.totalorder %s25, 0
      %p297 = por %p295, %p296
      %p298 = scmp.ne.s32.totalorder %s290, %s292
      %p299 = scmp.eq.s32.totalorder %s30, 1
      %p300 = por %p298, %p299
      %p301 = scmp.ne.s32.totalorder %s292, %s293
      %p302 = scmp.eq.s32.totalorder %s30, 0
      %p303 = por %p301, %p302
      %p304 = scmp.ne.s32.totalorder %s292, %s293
      %p305 = scmp.eq.s32.totalorder %s31, 1
      %p306 = por %p304, %p305
      %p308 = scmp.ne.s32.totalorder %s293, %s307
      %p309 = scmp.eq.s32.totalorder %s31, 0
      %p310 = por %p308, %p309
      %s311 = ssub.s32 %s25, %s32
      %p312 = scmp.eq.s32.totalorder %s311, 0
      %s314 = sadd.s32 %s313, 1
      %s315 = scalar_select %p312, %s313, %s314
      %p318 = pneg %p312
      %p319 = scmp.eq.s32.totalorder %s25, 1
      %p320 = por %p318, %p319
      %p321 = scmp.ne.s32.totalorder %s313, %s316
      %p322 = scmp.eq.s32.totalorder %s25, 0
      %p323 = por %p321, %p322
      %p324 = scmp.ne.s32.totalorder %s313, %s316
      %p325 = scmp.eq.s32.totalorder %s30, 1
      %p326 = por %p324, %p325
      %p327 = scmp.ne.s32.totalorder %s316, %s317
      %p328 = scmp.eq.s32.totalorder %s30, 0
      %p329 = por %p327, %p328
      %p330 = scmp.ne.s32.totalorder %s316, %s317
      %p331 = scmp.eq.s32.totalorder %s31, 1
      %p332 = por %p330, %p331
      %p334 = scmp.ne.s32.totalorder %s317, %s333
      %p335 = scmp.eq.s32.totalorder %s31, 0
      %p336 = por %p334, %p335
      %p337 = scmp.le.s32.totalorder 1, %s25
      %p338 = scmp.lt.s32.totalorder %s25, 3
      %p339 = pnand %p337, %p338
      %p340 = pneg %p339
      // Predicated region
      $region9: #{tpu_custom_call.1} parent=5 // pred_check
        _
      $region10: #{tpu_custom_call.1} parent=5 // pred_check_branch
        %342 = sbr.rel (%p339) target = $region12
      $region11: #{tpu_custom_call.1} parent=5 // pred_region
        %s343 = ssub.s32 %s25, 1
        // Predicated region
        $region13: #{tpu_custom_call.1} parent=11 // pred_check
          %p344 = pneg %p72
        $region14: #{tpu_custom_call.1} parent=11 // pred_check_branch
          %346 = sbr.rel (%p344) target = $region16
        $region15: #{tpu_custom_call.1} parent=11 // pred_region
          _
        $region16: #{tpu_custom_call.1} parent=11 // pred_fallthru
          _
        // Predicated region
        $region17: #{tpu_custom_call.1} parent=11 // pred_check
          %p347 = pneg %p93
        $region18: #{tpu_custom_call.1} parent=11 // pred_check_branch
          %349 = sbr.rel (%p347) target = $region20
        $region19: #{tpu_custom_call.1} parent=11 // pred_region
          _
        $region20: #{tpu_custom_call.1} parent=11 // pred_fallthru
          _
        // Predicated region
        $region21: #{tpu_custom_call.1} parent=11 // pred_check
          %p350 = pneg %p114
        $region22: #{tpu_custom_call.1} parent=11 // pred_check_branch
          %352 = sbr.rel (%p350) target = $region24
        $region23: #{tpu_custom_call.1} parent=11 // pred_region
          _
        $region24: #{tpu_custom_call.1} parent=11 // pred_fallthru
          _
        // Predicated region
        $region25: #{tpu_custom_call.1} parent=11 // pred_check
          %p353 = pneg %p135
        $region26: #{tpu_custom_call.1} parent=11 // pred_check_branch
          %355 = sbr.rel (%p353) target = $region28
        $region27: #{tpu_custom_call.1} parent=11 // pred_region
          %s357 = ssub.s32 16, 16
          %358 = vsyncadd [#allocation4], %s357
          %s360 = sshll.u32 [#allocation3], 4
          %s361 = int_to_ptr.vmem [resolvable:$true] %s360
          %363 = dma.hbm_to_vmem [thread:$0]  %s4, 16, %s361, [#allocation4]
        $region28: #{tpu_custom_call.1} parent=11 // pred_fallthru
          _
        // Predicated region
        $region29: #{tpu_custom_call.1} parent=11 // pred_check
          %p364 = pneg %p156
        $region30: #{tpu_custom_call.1} parent=11 // pred_check_branch
          %366 = sbr.rel (%p364) target = $region32
        $region31: #{tpu_custom_call.1} parent=11 // pred_region
          _
        $region32: #{tpu_custom_call.1} parent=11 // pred_fallthru
          _
        // Predicated region
        $region33: #{tpu_custom_call.1} parent=11 // pred_check
          %p367 = pneg %p177
        $region34: #{tpu_custom_call.1} parent=11 // pred_check_branch
          %369 = sbr.rel (%p367) target = $region36
        $region35: #{tpu_custom_call.1} parent=11 // pred_region
          %s371 = ssub.s32 16, 16
          %372 = vsyncadd [#allocation7], %s371
          %s374 = sshll.u32 [#allocation6], 4
          %s375 = int_to_ptr.vmem [resolvable:$true] %s374
          %377 = dma.hbm_to_vmem [thread:$0]  %s6, 16, %s375, [#allocation7]
        $region36: #{tpu_custom_call.1} parent=11 // pred_fallthru
          _
        // Predicated region
        $region37: #{tpu_custom_call.1} parent=11 // pred_check
          %p378 = pneg %p198
        $region38: #{tpu_custom_call.1} parent=11 // pred_check_branch
          %380 = sbr.rel (%p378) target = $region40
        $region39: #{tpu_custom_call.1} parent=11 // pred_region
          %s382 = ssub.s32 16, 16
          %383 = vsyncadd [#allocation7], %s382
          %s385 = sshll.u32 [#allocation8], 4
          %s386 = int_to_ptr.vmem [resolvable:$true] %s385
          %388 = dma.hbm_to_vmem [thread:$0]  %s7, 16, %s386, [#allocation7]
        $region40: #{tpu_custom_call.1} parent=11 // pred_fallthru
          _
        // Predicated region
        $region41: #{tpu_custom_call.1} parent=11 // pred_check
          %p389 = pneg %p219
        $region42: #{tpu_custom_call.1} parent=11 // pred_check_branch
          %391 = sbr.rel (%p389) target = $region44
        $region43: #{tpu_custom_call.1} parent=11 // pred_region
          %s393 = ssub.s32 16, 16
          %394 = vsyncadd [#allocation10], %s393
          %s396 = sshll.u32 [#allocation9], 4
          %s397 = int_to_ptr.vmem [resolvable:$true] %s396
          %399 = dma.hbm_to_vmem [thread:$0]  %s8, 16, %s397, [#allocation10]
        $region44: #{tpu_custom_call.1} parent=11 // pred_fallthru
          _
        // Predicated region
        $region45: #{tpu_custom_call.1} parent=11 // pred_check
          %p400 = pneg %p240
        $region46: #{tpu_custom_call.1} parent=11 // pred_check_branch
          %402 = sbr.rel (%p400) target = $region48
        $region47: #{tpu_custom_call.1} parent=11 // pred_region
          _
        $region48: #{tpu_custom_call.1} parent=11 // pred_fallthru
          _
        // Predicated region
        $region49: #{tpu_custom_call.1} parent=11 // pred_check
          %p403 = pneg %p261
        $region50: #{tpu_custom_call.1} parent=11 // pred_check_branch
          %405 = sbr.rel (%p403) target = $region52
        $region51: #{tpu_custom_call.1} parent=11 // pred_region
          _
        $region52: #{tpu_custom_call.1} parent=11 // pred_fallthru
          _
        // Predicated region
        $region53: #{tpu_custom_call.1} parent=11 // pred_check
          %p406 = pneg %p282
        $region54: #{tpu_custom_call.1} parent=11 // pred_check_branch
          %408 = sbr.rel (%p406) target = $region56
        $region55: #{tpu_custom_call.1} parent=11 // pred_region
          _
        $region56: #{tpu_custom_call.1} parent=11 // pred_fallthru
          _
        // Predicated region
        $region57: #{tpu_custom_call.1} parent=11 // pred_check
          %p409 = pneg %p303
        $region58: #{tpu_custom_call.1} parent=11 // pred_check_branch
          %411 = sbr.rel (%p409) target = $region60
        $region59: #{tpu_custom_call.1} parent=11 // pred_region
          _
        $region60: #{tpu_custom_call.1} parent=11 // pred_fallthru
          _
      $region12: #{tpu_custom_call.1} parent=5 // pred_fallthru
        _
      %p412 = scmp.lt.s32.totalorder %s25, 2
      // Predicated region
      $region61: #{tpu_custom_call.1} parent=5 // pred_check
        %p413 = pneg %p412
      $region62: #{tpu_custom_call.1} parent=5 // pred_check_branch
        %415 = sbr.rel (%p413) target = $region64
      $region63: #{tpu_custom_call.1} parent=5 // pred_region
        // Predicated region
        $region65: #{tpu_custom_call.1} parent=63 // pred_check
          %p416 = pneg %p45
        $region66: #{tpu_custom_call.1} parent=63 // pred_check_branch
          %418 = sbr.rel (%p416) target = $region68
        $region67: #{tpu_custom_call.1} parent=63 // pred_region
          %p419 = scmp.lt.s32.totalorder %s25, 1
          %s420 = scalar_select %p419, %s25, 1
          %s421 = smul.addr %s420, 8
          %s422 = scalar_lea.vmem %s0, %s421
        $region68: #{tpu_custom_call.1} parent=63 // pred_fallthru
          _
      $region64: #{tpu_custom_call.1} parent=5 // pred_fallthru
        _
      %p423 = scmp.le.s32.totalorder 1, %s25
      %p424 = scmp.lt.s32.totalorder %s25, 3
      %p425 = pnand %p423, %p424
      %p426 = pneg %p425
      // Predicated region
      $region69: #{tpu_custom_call.1} parent=5 // pred_check
        _
      $region70: #{tpu_custom_call.1} parent=5 // pred_check_branch
        %428 = sbr.rel (%p425) target = $region72
      $region71: #{tpu_custom_call.1} parent=5 // pred_region
        %s429 = ssub.s32 %s25, 1
        // Predicated region
        $region73: #{tpu_custom_call.1} parent=71 // pred_check
          %p430 = pneg %p135
        $region74: #{tpu_custom_call.1} parent=71 // pred_check_branch
          %432 = sbr.rel (%p430) target = $region76
        $region75: #{tpu_custom_call.1} parent=71 // pred_region
          %433 = dma.done [#allocation4], 16
        $region76: #{tpu_custom_call.1} parent=71 // pred_fallthru
          _
        // Predicated region
        $region77: #{tpu_custom_call.1} parent=71 // pred_check
          %p434 = pneg %p177
        $region78: #{tpu_custom_call.1} parent=71 // pred_check_branch
          %436 = sbr.rel (%p434) target = $region80
        $region79: #{tpu_custom_call.1} parent=71 // pred_region
          %437 = dma.done [#allocation7], 16
        $region80: #{tpu_custom_call.1} parent=71 // pred_fallthru
          _
        // Predicated region
        $region81: #{tpu_custom_call.1} parent=71 // pred_check
          %p438 = pneg %p198
        $region82: #{tpu_custom_call.1} parent=71 // pred_check_branch
          %440 = sbr.rel (%p438) target = $region84
        $region83: #{tpu_custom_call.1} parent=71 // pred_region
          %441 = dma.done [#allocation7], 16
        $region84: #{tpu_custom_call.1} parent=71 // pred_fallthru
          _
        // Predicated region
        $region85: #{tpu_custom_call.1} parent=71 // pred_check
          %p442 = pneg %p219
        $region86: #{tpu_custom_call.1} parent=71 // pred_check_branch
          %444 = sbr.rel (%p442) target = $region88
        $region87: #{tpu_custom_call.1} parent=71 // pred_region
          %445 = dma.done [#allocation10], 16
        $region88: #{tpu_custom_call.1} parent=71 // pred_fallthru
          _
        %p446 = scmp.lt.s32.totalorder %s30, 1
        %s447 = scalar_select %p446, %s30, 1
        %s448 = smul.addr %s447, 8
        %s449 = scalar_lea.vmem %s0, %s448
        %p450 = pneg %p51
        %p451 = pneg %p48
        %p452 = pneg %p72
        %p453 = pneg %p69
        %p454 = pneg %p93
        %p455 = pneg %p90
        %p456 = pneg %p114
        %p457 = pneg %p111
        %p458 = pneg %p135
        %p459 = pneg %p132
        %p460 = pneg %p156
        %p461 = pneg %p153
        %p462 = pneg %p177
        %p463 = pneg %p174
        %p464 = pneg %p198
        %p465 = pneg %p195
        %p466 = pneg %p219
        %p467 = pneg %p216
        %p468 = pneg %p240
        %p469 = pneg %p237
        %p470 = pneg %p261
        %p471 = pneg %p258
        %p472 = pneg %p282
        %p473 = pneg %p279
        %p474 = pneg %p303
        %p475 = pneg %p300
        %p476 = pneg %p329
        %p477 = pneg %p326
        %s478 = sand.u32 %s316, 1
        %s479 = scalar_lea.sflag [#allocation5], %s478
        %s480 = sand.u32 %s316, 1
        %s481 = smul.addr %s480, 8
        %s482 = scalar_lea.vmem [#allocation11], %s481
        %p483 = scmp.lt.s32.totalorder %s30, 1
        %s484 = scalar_select %p483, %s30, 1
        %s485 = smul.addr %s484, 8
        %s486 = scalar_lea.vmem %s0, %s485
        %v488 = vld [vmem:[%s486] sm:$0xff]
        %v489 = vld [vmem:[%s1] sm:$0x1]
        %v490 = vld [vmem:[%s2] sm:$0x1]
        %vm491 = vcmask 261120
        %v492 = vsel %vm491, %v488, 0.0
        %493 = vadd.xlane.f32.xlu0 %v492
        %v494 = vpop.xlane.xlu0 %493
        %v495 = vrcp.pop 32.0
        %v496 = vmul.f32 %v494, %v495
        %v497 = vmul.f32 %v488, %v488
        %v498 = vsel %vm491, %v497, 0.0
        %499 = vadd.xlane.f32.xlu0 %v498
        %v500 = vpop.xlane.xlu0 %499
        %v501 = vmul.f32 %v500, %v495
        %v502 = vmul.f32 %v496, %v496
        %v503 = vsub.f32 %v501, %v502
        %v504 = vsub.f32 %v488, %v496
        %v505 = vadd.f32 %v503, 1e-05
        %v506 = vrsqrt.pop %v505
        %v507 = vmul.f32 %v504, %v506
        %v509 = vlaneseq
        %v510 = vshrl.u32 %v509, 7
        %v511 = vsub.s32 0, %v510
        %v512 = vrot.slane %v489, %v511
        %v514 = vmul.f32 %v507, %v512
        %v516 = vlaneseq
        %v517 = vshrl.u32 %v516, 7
        %v518 = vsub.s32 0, %v517
        %v519 = vrot.slane %v490, %v518
        %v521 = vadd.f32 %v514, %v519
        %v522 = vpack.c.bf16 %v521, %v521
        %v523 = vld [vmem:[%s3] sm:$0xf]
        %v524 = vld [vmem:[%s3 + $0x4] sm:$0xf]
        %v525 = vld [vmem:[%s3 + $0x8] sm:$0xf]
        %v526 = vld [vmem:[%s3 + $0xc] sm:$0xf]
        %v527 = vld [vmem:[#allocation3] sm:$0x1]
        %v529 = vlaneseq
        %v530 = vshrl.u32 %v529, 7
        %v531 = vsub.s32 0, %v530
        %v532 = vrot.slane %v527, %v531
        %v538 = vunpack.c.l.b16 %v523
        %v539 = vunpack.c.l.b16 %v524
        %v540 = vunpack.c.l.b16 %v525
        %v541 = vunpack.c.l.b16 %v526
        %v542 = vpack.c.b16 %v539, %v538
        %v543 = vpack.c.b16 %v541, %v540
        %v547 = vsel %vm491, %v522, 0
        %549 = vmatprep.subr.bf16.mxu0 0
        %550 = vmatpush1.bf16.msra.mxu0 %v542
        %551 = vmatprep.subr.bf16.mxu0 0
        %552 = vmatpush1.bf16.msra.mxu0 %v543
        %553 = vmatprep.subr.bf16.mxu0 0
        %554 = vmatpush1.bf16.msra.mxu0 0
        %555 = vmatprep.subr.bf16.mxu0 0
        %556 = vmatpush1.bf16.msra.mxu0 0
        %557 = vmatprep.subr.bf16.mxu0 0
        %558 = vmatpush1.bf16.msra.mxu0 0
        %559 = vmatprep.subr.bf16.mxu0 0
        %560 = vmatpush1.bf16.msra.mxu0 0
        %561 = vmatprep.subr.bf16.mxu0 0
        %562 = vmatpush1.bf16.msra.mxu0 0
        %563 = vmatprep.subr.bf16.mxu0 0
        %564 = vmatpush1.bf16.msra.mxu0 0
        %565 = vmatprep.subr.bf16.mxu0 0
        %566 = vmatpush1.bf16.msra.mxu0 0
        %567 = vmatprep.subr.bf16.mxu0 0
        %568 = vmatpush1.bf16.msra.mxu0 0
        %569 = vmatprep.subr.bf16.mxu0 0
        %570 = vmatpush1.bf16.msra.mxu0 0
        %571 = vmatprep.subr.bf16.mxu0 0
        %572 = vmatpush1.bf16.msra.mxu0 0
        %573 = vmatprep.subr.bf16.mxu0 0
        %574 = vmatpush1.bf16.msra.mxu0 0
        %575 = vmatprep.subr.bf16.mxu0 0
        %576 = vmatpush1.bf16.msra.mxu0 0
        %577 = vmatprep.subr.bf16.mxu0 0
        %578 = vmatpush1.bf16.msra.mxu0 0
        %579 = vmatprep.subr.bf16.mxu0 0
        %580 = vmatpush1.bf16.msra.mxu0 0
        %581 = vmatprep.mubr.bf16.mxu0 0
        %582 = vmatmul.mubr.bf16.gmra.mrb[0].mxu0 %v547
        %v583 = vpop.f32.mrb[0].mxu0
        %v584 = vadd.f32 %v532, %v583
        %v585 = vpop.f32.mrb[0].mxu0
        %v586 = vpop.f32.mrb[0].mxu0
        %v587 = vpop.f32.mrb[0].mxu0
        %588 = vdwg.mxu0
        %v589 = vpack.c.bf16 %v584, %v584
        %591 = vrot.lane.b32.xlu0 %v589, 96
        %v592 = vpop.permute.xlu0 %591
        %vm593 = vcmask 64512
        %v595 = vsel %vm593, %v589, 0
        %v598 = vsel %vm593, %v592, 0
        %600 = vmatprep.subr.bf16.mxu0 0
        %601 = vmatpush1.bf16.xpose.msra.mxu0 %v598
        %602 = vmatprep.subr.bf16.mxu0 0
        %603 = vmatpush1.bf16.xpose.msra.mxu0 0
        %604 = vmatprep.subr.bf16.mxu0 0
        %605 = vmatpush1.bf16.xpose.msra.mxu0 0
        %606 = vmatprep.subr.bf16.mxu0 0
        %607 = vmatpush1.bf16.xpose.msra.mxu0 0
        %608 = vmatprep.subr.bf16.mxu0 0
        %609 = vmatpush1.bf16.xpose.msra.mxu0 0
        %610 = vmatprep.subr.bf16.mxu0 0
        %611 = vmatpush1.bf16.xpose.msra.mxu0 0
        %612 = vmatprep.subr.bf16.mxu0 0
        %613 = vmatpush1.bf16.xpose.msra.mxu0 0
        %614 = vmatprep.subr.bf16.mxu0 0
        %615 = vmatpush1.bf16.xpose.msra.mxu0 0
        %616 = vmatprep.subr.bf16.mxu0 0
        %617 = vmatpush1.bf16.xpose.msra.mxu0 0
        %618 = vmatprep.subr.bf16.mxu0 0
        %619 = vmatpush1.bf16.xpose.msra.mxu0 0
        %620 = vmatprep.subr.bf16.mxu0 0
        %621 = vmatpush1.bf16.xpose.msra.mxu0 0
        %622 = vmatprep.subr.bf16.mxu0 0
        %623 = vmatpush1.bf16.xpose.msra.mxu0 0
        %624 = vmatprep.subr.bf16.mxu0 0
        %625 = vmatpush1.bf16.xpose.msra.mxu0 0
        %626 = vmatprep.subr.bf16.mxu0 0
        %627 = vmatpush1.bf16.xpose.msra.mxu0 0
        %628 = vmatprep.subr.bf16.mxu0 0
        %629 = vmatpush1.bf16.xpose.msra.mxu0 0
        %630 = vmatprep.subr.bf16.mxu0 0
        %631 = vmatpush1.bf16.xpose.msra.mxu0 0
        %632 = vmatprep.mubr.bf16.mxu0 0
        %633 = vmatmul.mubr.bf16.gmra.mrb[0].mxu0 %v595
        %v634 = vpop.f32.mrb[0].mxu0
        %v635 = vadd.f32 0.0, %v634
        %v636 = vpop.f32.mrb[0].mxu0
        %v637 = vpop.f32.mrb[0].mxu0
        %v638 = vpop.f32.mrb[0].mxu0
        %639 = vdwg.mxu0
        %v640 = vsel %vm593, %v635, -inf
        %641 = vmax.xlane.f32.xlu0 %v640
        %v642 = vpop.xlane.xlu0 %641
        %v643 = vsub.f32 -inf, %v642
        %v644 = vmul.f32 %v643, 1.442695
        %v645 = vpow.pop %v644
        %v646 = vsub.f32 %v635, %v642
        %v647 = vmul.f32 %v646, 1.442695
        %v648 = vpow.pop %v647
        %v649 = vmul.f32 %v645, 0.0
        %v650 = vsel %vm593, %v648, 0.0
        %651 = vadd.xlane.f32.xlu0 %v650
        %v652 = vpop.xlane.xlu0 %651
        %v653 = vadd.f32 %v649, %v652
        %v654 = vpack.c.bf16 %v648, %v648
        %655 = vrot.lane.b32.xlu0 %v589, 64
        %v656 = vpop.permute.xlu0 %655
        %v658 = vsel %vm593, %v654, 0
        %vm660 = vcmask 1043456
        %v662 = vsel %vm660, %v656, 0
        %664 = vmatprep.subr.bf16.mxu0 0
        %665 = vmatpush1.bf16.msra.mxu0 %v662
        %666 = vmatprep.subr.bf16.mxu0 0
        %667 = vmatpush1.bf16.msra.mxu0 0
        %668 = vmatprep.subr.bf16.mxu0 0
        %669 = vmatpush1.bf16.msra.mxu0 0
        %670 = vmatprep.subr.bf16.mxu0 0
        %671 = vmatpush1.bf16.msra.mxu0 0
        %672 = vmatprep.subr.bf16.mxu0 0
        %673 = vmatpush1.bf16.msra.mxu0 0
        %674 = vmatprep.subr.bf16.mxu0 0
        %675 = vmatpush1.bf16.msra.mxu0 0
        %676 = vmatprep.subr.bf16.mxu0 0
        %677 = vmatpush1.bf16.msra.mxu0 0
        %678 = vmatprep.subr.bf16.mxu0 0
        %679 = vmatpush1.bf16.msra.mxu0 0
        %680 = vmatprep.subr.bf16.mxu0 0
        %681 = vmatpush1.bf16.msra.mxu0 0
        %682 = vmatprep.subr.bf16.mxu0 0
        %683 = vmatpush1.bf16.msra.mxu0 0
        %684 = vmatprep.subr.bf16.mxu0 0
        %685 = vmatpush1.bf16.msra.mxu0 0
        %686 = vmatprep.subr.bf16.mxu0 0
        %687 = vmatpush1.bf16.msra.mxu0 0
        %688 = vmatprep.subr.bf16.mxu0 0
        %689 = vmatpush1.bf16.msra.mxu0 0
        %690 = vmatprep.subr.bf16.mxu0 0
        %691 = vmatpush1.bf16.msra.mxu0 0
        %692 = vmatprep.subr.bf16.mxu0 0
        %693 = vmatpush1.bf16.msra.mxu0 0
        %694 = vmatprep.subr.bf16.mxu0 0
        %695 = vmatpush1.bf16.msra.mxu0 0
        %696 = vmatprep.mubr.bf16.mxu0 0
        %697 = vmatmul.mubr.bf16.gmra.mrb[0].mxu0 %v658
        %v698 = vpop.f32.mrb[0].mxu0
        %v699 = vadd.f32 0.0, %v698
        %v700 = vpop.f32.mrb[0].mxu0
        %v701 = vpop.f32.mrb[0].mxu0
        %v702 = vpop.f32.mrb[0].mxu0
        %703 = vdwg.mxu0
        %v704 = vadd.f32 %v649, %v699
        %v705 = vrcp.pop %v653
        %v706 = vmul.f32 %v704, %v705
        %707 = vst.msk [vmem:[#allocation2] sm:$0xff] %vm593, %v706
        %708 = vrot.lane.b32.xlu0 %v589, 120
        %v709 = vpop.permute.xlu0 %708
        %710 = vrot.lane.b32.xlu0 %v589, 88
        %v711 = vpop.permute.xlu0 %710
        %v713 = vsel %vm593, %v709, 0
        %v716 = vsel %vm593, %v711, 0
        %718 = vmatprep.subr.bf16.mxu0 0
        %719 = vmatpush1.bf16.xpose.msra.mxu0 %v716
        %720 = vmatprep.subr.bf16.mxu0 0
        %721 = vmatpush1.bf16.xpose.msra.mxu0 0
        %722 = vmatprep.subr.bf16.mxu0 0
        %723 = vmatpush1.bf16.xpose.msra.mxu0 0
        %724 = vmatprep.subr.bf16.mxu0 0
        %725 = vmatpush1.bf16.xpose.msra.mxu0 0
        %726 = vmatprep.subr.bf16.mxu0 0
        %727 = vmatpush1.bf16.xpose.msra.mxu0 0
        %728 = vmatprep.subr.bf16.mxu0 0
        %729 = vmatpush1.bf16.xpose.msra.mxu0 0
        %730 = vmatprep.subr.bf16.mxu0 0
        %731 = vmatpush1.bf16.xpose.msra.mxu0 0
        %732 = vmatprep.subr.bf16.mxu0 0
        %733 = vmatpush1.bf16.xpose.msra.mxu0 0
        %734 = vmatprep.subr.bf16.mxu0 0
        %735 = vmatpush1.bf16.xpose.msra.mxu0 0
        %736 = vmatprep.subr.bf16.mxu0 0
        %737 = vmatpush1.bf16.xpose.msra.mxu0 0
        %738 = vmatprep.subr.bf16.mxu0 0
        %739 = vmatpush1.bf16.xpose.msra.mxu0 0
        %740 = vmatprep.subr.bf16.mxu0 0
        %741 = vmatpush1.bf16.xpose.msra.mxu0 0
        %742 = vmatprep.subr.bf16.mxu0 0
        %743 = vmatpush1.bf16.xpose.msra.mxu0 0
        %744 = vmatprep.subr.bf16.mxu0 0
        %745 = vmatpush1.bf16.xpose.msra.mxu0 0
        %746 = vmatprep.subr.bf16.mxu0 0
        %747 = vmatpush1.bf16.xpose.msra.mxu0 0
        %748 = vmatprep.subr.bf16.mxu0 0
        %749 = vmatpush1.bf16.xpose.msra.mxu0 0
        %750 = vmatprep.mubr.bf16.mxu0 0
        %751 = vmatmul.mubr.bf16.gmra.mrb[0].mxu0 %v713
        %v752 = vpop.f32.mrb[0].mxu0
        %v753 = vadd.f32 0.0, %v752
        %v754 = vpop.f32.mrb[0].mxu0
        %v755 = vpop.f32.mrb[0].mxu0
        %v756 = vpop.f32.mrb[0].mxu0
        %757 = vdwg.mxu0
        %v758 = vsel %vm593, %v753, -inf
        %759 = vmax.xlane.f32.xlu0 %v758
        %v760 = vpop.xlane.xlu0 %759
        %v761 = vsub.f32 -inf, %v760
        %v762 = vmul.f32 %v761, 1.442695
        %v763 = vpow.pop %v762
        %v764 = vsub.f32 %v753, %v760
        %v765 = vmul.f32 %v764, 1.442695
        %v766 = vpow.pop %v765
        %v767 = vmul.f32 %v763, 0.0
        %v768 = vsel %vm593, %v766, 0.0
        %769 = vadd.xlane.f32.xlu0 %v768
        %v770 = vpop.xlane.xlu0 %769
        %v771 = vadd.f32 %v767, %v770
        %v772 = vpack.c.bf16 %v766, %v766
        %773 = vrot.lane.b32.xlu0 %v589, 56
        %v774 = vpop.permute.xlu0 %773
        %v776 = vsel %vm593, %v772, 0
        %v779 = vsel %vm660, %v774, 0
        %781 = vmatprep.subr.bf16.mxu0 0
        %782 = vmatpush1.bf16.msra.mxu0 %v779
        %783 = vmatprep.subr.bf16.mxu0 0
        %784 = vmatpush1.bf16.msra.mxu0 0
        %785 = vmatprep.subr.bf16.mxu0 0
        %786 = vmatpush1.bf16.msra.mxu0 0
        %787 = vmatprep.subr.bf16.mxu0 0
        %788 = vmatpush1.bf16.msra.mxu0 0
        %789 = vmatprep.subr.bf16.mxu0 0
        %790 = vmatpush1.bf16.msra.mxu0 0
        %791 = vmatprep.subr.bf16.mxu0 0
        %792 = vmatpush1.bf16.msra.mxu0 0
        %793 = vmatprep.subr.bf16.mxu0 0
        %794 = vmatpush1.bf16.msra.mxu0 0
        %795 = vmatprep.subr.bf16.mxu0 0
        %796 = vmatpush1.bf16.msra.mxu0 0
        %797 = vmatprep.subr.bf16.mxu0 0
        %798 = vmatpush1.bf16.msra.mxu0 0
        %799 = vmatprep.subr.bf16.mxu0 0
        %800 = vmatpush1.bf16.msra.mxu0 0
        %801 = vmatprep.subr.bf16.mxu0 0
        %802 = vmatpush1.bf16.msra.mxu0 0
        %803 = vmatprep.subr.bf16.mxu0 0
        %804 = vmatpush1.bf16.msra.mxu0 0
        %805 = vmatprep.subr.bf16.mxu0 0
        %806 = vmatpush1.bf16.msra.mxu0 0
        %807 = vmatprep.subr.bf16.mxu0 0
        %808 = vmatpush1.bf16.msra.mxu0 0
        %809 = vmatprep.subr.bf16.mxu0 0
        %810 = vmatpush1.bf16.msra.mxu0 0
        %811 = vmatprep.subr.bf16.mxu0 0
        %812 = vmatpush1.bf16.msra.mxu0 0
        %813 = vmatprep.mubr.bf16.mxu0 0
        %814 = vmatmul.mubr.bf16.gmra.mrb[0].mxu0 %v776
        %v815 = vpop.f32.mrb[0].mxu0
        %v816 = vadd.f32 0.0, %v815
        %v817 = vpop.f32.mrb[0].mxu0
        %v818 = vpop.f32.mrb[0].mxu0
        %v819 = vpop.f32.mrb[0].mxu0
        %820 = vdwg.mxu0
        %v821 = vadd.f32 %v767, %v816
        %v822 = vrcp.pop %v771
        %v823 = vmul.f32 %v821, %v822
        %825 = vrot.lane.b32.xlu0 %v823, 8
        %v826 = vpop.permute.xlu0 %825
        %vm828 = vcmask 130112
        %829 = vst.msk [vmem:[#allocation2] sm:$0xff] %vm828, %v826
        %830 = vrot.lane.b32.xlu0 %v589, 112
        %v831 = vpop.permute.xlu0 %830
        %832 = vrot.lane.b32.xlu0 %v589, 80
        %v833 = vpop.permute.xlu0 %832
        %v835 = vsel %vm593, %v831, 0
        %v838 = vsel %vm593, %v833, 0
        %840 = vmatprep.subr.bf16.mxu0 0
        %841 = vmatpush1.bf16.xpose.msra.mxu0 %v838
        %842 = vmatprep.subr.bf16.mxu0 0
        %843 = vmatpush1.bf16.xpose.msra.mxu0 0
        %844 = vmatprep.subr.bf16.mxu0 0
        %845 = vmatpush1.bf16.xpose.msra.mxu0 0
        %846 = vmatprep.subr.bf16.mxu0 0
        %847 = vmatpush1.bf16.xpose.msra.mxu0 0
        %848 = vmatprep.subr.bf16.mxu0 0
        %849 = vmatpush1.bf16.xpose.msra.mxu0 0
        %850 = vmatprep.subr.bf16.mxu0 0
        %851 = vmatpush1.bf16.xpose.msra.mxu0 0
        %852 = vmatprep.subr.bf16.mxu0 0
        %853 = vmatpush1.bf16.xpose.msra.mxu0 0
        %854 = vmatprep.subr.bf16.mxu0 0
        %855 = vmatpush1.bf16.xpose.msra.mxu0 0
        %856 = vmatprep.subr.bf16.mxu0 0
        %857 = vmatpush1.bf16.xpose.msra.mxu0 0
        %858 = vmatprep.subr.bf16.mxu0 0
        %859 = vmatpush1.bf16.xpose.msra.mxu0 0
        %860 = vmatprep.subr.bf16.mxu0 0
        %861 = vmatpush1.bf16.xpose.msra.mxu0 0
        %862 = vmatprep.subr.bf16.mxu0 0
        %863 = vmatpush1.bf16.xpose.msra.mxu0 0
        %864 = vmatprep.subr.bf16.mxu0 0
        %865 = vmatpush1.bf16.xpose.msra.mxu0 0
        %866 = vmatprep.subr.bf16.mxu0 0
        %867 = vmatpush1.bf16.xpose.msra.mxu0 0
        %868 = vmatprep.subr.bf16.mxu0 0
        %869 = vmatpush1.bf16.xpose.msra.mxu0 0
        %870 = vmatprep.subr.bf16.mxu0 0
        %871 = vmatpush1.bf16.xpose.msra.mxu0 0
        %872 = vmatprep.mubr.bf16.mxu0 0
        %873 = vmatmul.mubr.bf16.gmra.mrb[0].mxu0 %v835
        %v874 = vpop.f32.mrb[0].mxu0
        %v875 = vadd.f32 0.0, %v874
        %v876 = vpop.f32.mrb[0].mxu0
        %v877 = vpop.f32.mrb[0].mxu0
        %v878 = vpop.f32.mrb[0].mxu0
        %879 = vdwg.mxu0
        %v880 = vsel %vm593, %v875, -inf
        %881 = vmax.xlane.f32.xlu0 %v880
        %v882 = vpop.xlane.xlu0 %881
        %v883 = vsub.f32 -inf, %v882
        %v884 = vmul.f32 %v883, 1.442695
        %v885 = vpow.pop %v884
        %v886 = vsub.f32 %v875, %v882
        %v887 = vmul.f32 %v886, 1.442695
        %v888 = vpow.pop %v887
        %v889 = vmul.f32 %v885, 0.0
        %v890 = vsel %vm593, %v888, 0.0
        %891 = vadd.xlane.f32.xlu0 %v890
        %v892 = vpop.xlane.xlu0 %891
        %v893 = vadd.f32 %v889, %v892
        %v894 = vpack.c.bf16 %v888, %v888
        %895 = vrot.lane.b32.xlu0 %v589, 48
        %v896 = vpop.permute.xlu0 %895
        %v898 = vsel %vm593, %v894, 0
        %v901 = vsel %vm660, %v896, 0
        %903 = vmatprep.subr.bf16.mxu0 0
        %904 = vmatpush1.bf16.msra.mxu0 %v901
        %905 = vmatprep.subr.bf16.mxu0 0
        %906 = vmatpush1.bf16.msra.mxu0 0
        %907 = vmatprep.subr.bf16.mxu0 0
        %908 = vmatpush1.bf16.msra.mxu0 0
        %909 = vmatprep.subr.bf16.mxu0 0
        %910 = vmatpush1.bf16.msra.mxu0 0
        %911 = vmatprep.subr.bf16.mxu0 0
        %912 = vmatpush1.bf16.msra.mxu0 0
        %913 = vmatprep.subr.bf16.mxu0 0
        %914 = vmatpush1.bf16.msra.mxu0 0
        %915 = vmatprep.subr.bf16.mxu0 0
        %916 = vmatpush1.bf16.msra.mxu0 0
        %917 = vmatprep.subr.bf16.mxu0 0
        %918 = vmatpush1.bf16.msra.mxu0 0
        %919 = vmatprep.subr.bf16.mxu0 0
        %920 = vmatpush1.bf16.msra.mxu0 0
        %921 = vmatprep.subr.bf16.mxu0 0
        %922 = vmatpush1.bf16.msra.mxu0 0
        %923 = vmatprep.subr.bf16.mxu0 0
        %924 = vmatpush1.bf16.msra.mxu0 0
        %925 = vmatprep.subr.bf16.mxu0 0
        %926 = vmatpush1.bf16.msra.mxu0 0
        %927 = vmatprep.subr.bf16.mxu0 0
        %928 = vmatpush1.bf16.msra.mxu0 0
        %929 = vmatprep.subr.bf16.mxu0 0
        %930 = vmatpush1.bf16.msra.mxu0 0
        %931 = vmatprep.subr.bf16.mxu0 0
        %932 = vmatpush1.bf16.msra.mxu0 0
        %933 = vmatprep.subr.bf16.mxu0 0
        %934 = vmatpush1.bf16.msra.mxu0 0
        %935 = vmatprep.mubr.bf16.mxu0 0
        %936 = vmatmul.mubr.bf16.gmra.mrb[0].mxu0 %v898
        %v937 = vpop.f32.mrb[0].mxu0
        %v938 = vadd.f32 0.0, %v937
        %v939 = vpop.f32.mrb[0].mxu0
        %v940 = vpop.f32.mrb[0].mxu0
        %v941 = vpop.f32.mrb[0].mxu0
        %942 = vdwg.mxu0
        %v943 = vadd.f32 %v889, %v938
        %v944 = vrcp.pop %v893
        %v945 = vmul.f32 %v943, %v944
        %947 = vrot.lane.b32.xlu0 %v945, 16
        %v948 = vpop.permute.xlu0 %947
        %vm950 = vcmask 195712
        %951 = vst.msk [vmem:[#allocation2] sm:$0xff] %vm950, %v948
        %952 = vrot.lane.b32.xlu0 %v589, 104
        %v953 = vpop.permute.xlu0 %952
        %954 = vrot.lane.b32.xlu0 %v589, 72
        %v955 = vpop.permute.xlu0 %954
        %v957 = vsel %vm593, %v953, 0
        %v960 = vsel %vm593, %v955, 0
        %962 = vmatprep.subr.bf16.mxu0 0
        %963 = vmatpush1.bf16.xpose.msra.mxu0 %v960
        %964 = vmatprep.subr.bf16.mxu0 0
        %965 = vmatpush1.bf16.xpose.msra.mxu0 0
        %966 = vmatprep.subr.bf16.mxu0 0
        %967 = vmatpush1.bf16.xpose.msra.mxu0 0
        %968 = vmatprep.subr.bf16.mxu0 0
        %969 = vmatpush1.bf16.xpose.msra.mxu0 0
        %970 = vmatprep.subr.bf16.mxu0 0
        %971 = vmatpush1.bf16.xpose.msra.mxu0 0
        %972 = vmatprep.subr.bf16.mxu0 0
        %973 = vmatpush1.bf16.xpose.msra.mxu0 0
        %974 = vmatprep.subr.bf16.mxu0 0
        %975 = vmatpush1.bf16.xpose.msra.mxu0 0
        %976 = vmatprep.subr.bf16.mxu0 0
        %977 = vmatpush1.bf16.xpose.msra.mxu0 0
        %978 = vmatprep.subr.bf16.mxu0 0
        %979 = vmatpush1.bf16.xpose.msra.mxu0 0
        %980 = vmatprep.subr.bf16.mxu0 0
        %981 = vmatpush1.bf16.xpose.msra.mxu0 0
        %982 = vmatprep.subr.bf16.mxu0 0
        %983 = vmatpush1.bf16.xpose.msra.mxu0 0
        %984 = vmatprep.subr.bf16.mxu0 0
        %985 = vmatpush1.bf16.xpose.msra.mxu0 0
        %986 = vmatprep.subr.bf16.mxu0 0
        %987 = vmatpush1.bf16.xpose.msra.mxu0 0
        %988 = vmatprep.subr.bf16.mxu0 0
        %989 = vmatpush1.bf16.xpose.msra.mxu0 0
        %990 = vmatprep.subr.bf16.mxu0 0
        %991 = vmatpush1.bf16.xpose.msra.mxu0 0
        %992 = vmatprep.subr.bf16.mxu0 0
        %993 = vmatpush1.bf16.xpose.msra.mxu0 0
        %994 = vmatprep.mubr.bf16.mxu0 0
        %995 = vmatmul.mubr.bf16.gmra.mrb[0].mxu0 %v957
        %v996 = vpop.f32.mrb[0].mxu0
        %v997 = vadd.f32 0.0, %v996
        %v998 = vpop.f32.mrb[0].mxu0
        %v999 = vpop.f32.mrb[0].mxu0
        %v1000 = vpop.f32.mrb[0].mxu0
        %1001 = vdwg.mxu0
        %v1002 = vsel %vm593, %v997, -inf
        %1003 = vmax.xlane.f32.xlu0 %v1002
        %v1004 = vpop.xlane.xlu0 %1003
        %v1005 = vsub.f32 -inf, %v1004
        %v1006 = vmul.f32 %v1005, 1.442695
        %v1007 = vpow.pop %v1006
        %v1008 = vsub.f32 %v997, %v1004
        %v1009 = vmul.f32 %v1008, 1.442695
        %v1010 = vpow.pop %v1009
        %v1011 = vmul.f32 %v1007, 0.0
        %v1012 = vsel %vm593, %v1010, 0.0
        %1013 = vadd.xlane.f32.xlu0 %v1012
        %v1014 = vpop.xlane.xlu0 %1013
        %v1015 = vadd.f32 %v1011, %v1014
        %v1016 = vpack.c.bf16 %v1010, %v1010
        %1017 = vrot.lane.b32.xlu0 %v589, 40
        %v1018 = vpop.permute.xlu0 %1017
        %v1020 = vsel %vm593, %v1016, 0
        %v1023 = vsel %vm660, %v1018, 0
        %1025 = vmatprep.subr.bf16.mxu0 0
        %1026 = vmatpush1.bf16.msra.mxu0 %v1023
        %1027 = vmatprep.subr.bf16.mxu0 0
        %1028 = vmatpush1.bf16.msra.mxu0 0
        %1029 = vmatprep.subr.bf16.mxu0 0
        %1030 = vmatpush1.bf16.msra.mxu0 0
        %1031 = vmatprep.subr.bf16.mxu0 0
        %1032 = vmatpush1.bf16.msra.mxu0 0
        %1033 = vmatprep.subr.bf16.mxu0 0
        %1034 = vmatpush1.bf16.msra.mxu0 0
        %1035 = vmatprep.subr.bf16.mxu0 0
        %1036 = vmatpush1.bf16.msra.mxu0 0
        %1037 = vmatprep.subr.bf16.mxu0 0
        %1038 = vmatpush1.bf16.msra.mxu0 0
        %1039 = vmatprep.subr.bf16.mxu0 0
        %1040 = vmatpush1.bf16.msra.mxu0 0
        %1041 = vmatprep.subr.bf16.mxu0 0
        %1042 = vmatpush1.bf16.msra.mxu0 0
        %1043 = vmatprep.subr.bf16.mxu0 0
        %1044 = vmatpush1.bf16.msra.mxu0 0
        %1045 = vmatprep.subr.bf16.mxu0 0
        %1046 = vmatpush1.bf16.msra.mxu0 0
        %1047 = vmatprep.subr.bf16.mxu0 0
        %1048 = vmatpush1.bf16.msra.mxu0 0
        %1049 = vmatprep.subr.bf16.mxu0 0
        %1050 = vmatpush1.bf16.msra.mxu0 0
        %1051 = vmatprep.subr.bf16.mxu0 0
        %1052 = vmatpush1.bf16.msra.mxu0 0
        %1053 = vmatprep.subr.bf16.mxu0 0
        %1054 = vmatpush1.bf16.msra.mxu0 0
        %1055 = vmatprep.subr.bf16.mxu0 0
        %1056 = vmatpush1.bf16.msra.mxu0 0
        %1057 = vmatprep.mubr.bf16.mxu0 0
        %1058 = vmatmul.mubr.bf16.gmra.mrb[0].mxu0 %v1020
        %v1059 = vpop.f32.mrb[0].mxu0
        %v1060 = vadd.f32 0.0, %v1059
        %v1061 = vpop.f32.mrb[0].mxu0
        %v1062 = vpop.f32.mrb[0].mxu0
        %v1063 = vpop.f32.mrb[0].mxu0
        %1064 = vdwg.mxu0
        %v1065 = vadd.f32 %v1011, %v1060
        %v1066 = vrcp.pop %v1015
        %v1067 = vmul.f32 %v1065, %v1066
        %1069 = vrot.lane.b32.xlu0 %v1067, 24
        %v1070 = vpop.permute.xlu0 %1069
        %vm1072 = vcmask 261312
        %1073 = vst.msk [vmem:[#allocation2] sm:$0xff] %vm1072, %v1070
        %v1074 = vld [vmem:[#allocation2] sm:$0xff]
        %v1075 = vpack.c.bf16 %v1074, %v1074
        %v1076 = vld [vmem:[%s5] sm:$0xf]
        %v1077 = vld [vmem:[%s5 + $0x4] sm:$0xf]
        %v1078 = vld [vmem:[%s5 + $0x8] sm:$0xf]
        %v1079 = vld [vmem:[%s5 + $0xc] sm:$0xf]
        %v1080 = vld [vmem:[#allocation6] sm:$0x1]
        %v1082 = vlaneseq
        %v1083 = vshrl.u32 %v1082, 7
        %v1084 = vsub.s32 0, %v1083
        %v1085 = vrot.slane %v1080, %v1084
        %v1091 = vunpack.c.l.b16 %v1076
        %v1092 = vunpack.c.l.b16 %v1077
        %v1093 = vunpack.c.l.b16 %v1078
        %v1094 = vunpack.c.l.b16 %v1079
        %v1095 = vpack.c.b16 %v1092, %v1091
        %v1096 = vpack.c.b16 %v1094, %v1093
        %v1100 = vsel %vm491, %v1075, 0
        %1102 = vmatprep.subr.bf16.mxu0 0
        %1103 = vmatpush1.bf16.msra.mxu0 %v1095
        %1104 = vmatprep.subr.bf16.mxu0 0
        %1105 = vmatpush1.bf16.msra.mxu0 %v1096
        %1106 = vmatprep.subr.bf16.mxu0 0
        %1107 = vmatpush1.bf16.msra.mxu0 0
        %1108 = vmatprep.subr.bf16.mxu0 0
        %1109 = vmatpush1.bf16.msra.mxu0 0
        %1110 = vmatprep.subr.bf16.mxu0 0
        %1111 = vmatpush1.bf16.msra.mxu0 0
        %1112 = vmatprep.subr.bf16.mxu0 0
        %1113 = vmatpush1.bf16.msra.mxu0 0
        %1114 = vmatprep.subr.bf16.mxu0 0
        %1115 = vmatpush1.bf16.msra.mxu0 0
        %1116 = vmatprep.subr.bf16.mxu0 0
        %1117 = vmatpush1.bf16.msra.mxu0 0
        %1118 = vmatprep.subr.bf16.mxu0 0
        %1119 = vmatpush1.bf16.msra.mxu0 0
        %1120 = vmatprep.subr.bf16.mxu0 0
        %1121 = vmatpush1.bf16.msra.mxu0 0
        %1122 = vmatprep.subr.bf16.mxu0 0
        %1123 = vmatpush1.bf16.msra.mxu0 0
        %1124 = vmatprep.subr.bf16.mxu0 0
        %1125 = vmatpush1.bf16.msra.mxu0 0
        %1126 = vmatprep.subr.bf16.mxu0 0
        %1127 = vmatpush1.bf16.msra.mxu0 0
        %1128 = vmatprep.subr.bf16.mxu0 0
        %1129 = vmatpush1.bf16.msra.mxu0 0
        %1130 = vmatprep.subr.bf16.mxu0 0
        %1131 = vmatpush1.bf16.msra.mxu0 0
        %1132 = vmatprep.subr.bf16.mxu0 0
        %1133 = vmatpush1.bf16.msra.mxu0 0
        %1134 = vmatprep.mubr.bf16.mxu0 0
        %1135 = vmatmul.mubr.bf16.gmra.mrb[0].mxu0 %v1100
        %v1136 = vpop.f32.mrb[0].mxu0
        %v1137 = vadd.f32 %v1085, %v1136
        %v1138 = vpop.f32.mrb[0].mxu0
        %v1139 = vpop.f32.mrb[0].mxu0
        %v1140 = vpop.f32.mrb[0].mxu0
        %1141 = vdwg.mxu0
        %v1142 = vadd.f32 %v1137, %v488
        %v1143 = vld [vmem:[#allocation8] sm:$0x1]
        %v1144 = vld [vmem:[#allocation9] sm:$0x1]
        %v1145 = vsel %vm491, %v1142, 0.0
        %1146 = vadd.xlane.f32.xlu0 %v1145
        %v1147 = vpop.xlane.xlu0 %1146
        %v1148 = vmul.f32 %v1147, %v495
        %v1149 = vmul.f32 %v1142, %v1142
        %v1150 = vsel %vm491, %v1149, 0.0
        %1151 = vadd.xlane.f32.xlu0 %v1150
        %v1152 = vpop.xlane.xlu0 %1151
        %v1153 = vmul.f32 %v1152, %v495
        %v1154 = vmul.f32 %v1148, %v1148
        %v1155 = vsub.f32 %v1153, %v1154
        %v1156 = vsub.f32 %v1142, %v1148
        %v1157 = vadd.f32 %v1155, 1e-05
        %v1158 = vrsqrt.pop %v1157
        %v1159 = vmul.f32 %v1156, %v1158
        %v1161 = vlaneseq
        %v1162 = vshrl.u32 %v1161, 7
        %v1163 = vsub.s32 0, %v1162
        %v1164 = vrot.slane %v1143, %v1163
        %v1166 = vmul.f32 %v1159, %v1164
        %v1168 = vlaneseq
        %v1169 = vshrl.u32 %v1168, 7
        %v1170 = vsub.s32 0, %v1169
        %v1171 = vrot.slane %v1144, %v1170
        %v1173 = vadd.f32 %v1166, %v1171
        %v1174 = vpack.c.bf16 %v1173, %v1173
        %v1175 = vld [vmem:[%s9] sm:$0xf]
        %v1176 = vld [vmem:[%s9 + $0x4] sm:$0xf]
        %v1177 = vld [vmem:[%s9 + $0x8] sm:$0xf]
        %v1178 = vld [vmem:[%s9 + $0xc] sm:$0xf]
        %v1179 = vld [vmem:[%s10] sm:$0x1]
        %v1181 = vlaneseq
        %v1182 = vshrl.u32 %v1181, 7
        %v1183 = vsub.s32 0, %v1182
        %v1184 = vrot.slane %v1179, %v1183
        %v1190 = vunpack.c.l.b16 %v1175
        %v1191 = vunpack.c.l.b16 %v1176
        %v1192 = vunpack.c.l.b16 %v1177
        %v1193 = vunpack.c.l.b16 %v1178
        %v1194 = vpack.c.b16 %v1191, %v1190
        %v1195 = vpack.c.b16 %v1193, %v1192
        %v1199 = vsel %vm491, %v1174, 0
        %1201 = vmatprep.subr.bf16.mxu0 0
        %1202 = vmatpush1.bf16.msra.mxu0 %v1194
        %1203 = vmatprep.subr.bf16.mxu0 0
        %1204 = vmatpush1.bf16.msra.mxu0 %v1195
        %1205 = vmatprep.subr.bf16.mxu0 0
        %1206 = vmatpush1.bf16.msra.mxu0 0
        %1207 = vmatprep.subr.bf16.mxu0 0
        %1208 = vmatpush1.bf16.msra.mxu0 0
        %1209 = vmatprep.subr.bf16.mxu0 0
        %1210 = vmatpush1.bf16.msra.mxu0 0
        %1211 = vmatprep.subr.bf16.mxu0 0
        %1212 = vmatpush1.bf16.msra.mxu0 0
        %1213 = vmatprep.subr.bf16.mxu0 0
        %1214 = vmatpush1.bf16.msra.mxu0 0
        %1215 = vmatprep.subr.bf16.mxu0 0
        %1216 = vmatpush1.bf16.msra.mxu0 0
        %1217 = vmatprep.subr.bf16.mxu0 0
        %1218 = vmatpush1.bf16.msra.mxu0 0
        %1219 = vmatprep.subr.bf16.mxu0 0
        %1220 = vmatpush1.bf16.msra.mxu0 0
        %1221 = vmatprep.subr.bf16.mxu0 0
        %1222 = vmatpush1.bf16.msra.mxu0 0
        %1223 = vmatprep.subr.bf16.mxu0 0
        %1224 = vmatpush1.bf16.msra.mxu0 0
        %1225 = vmatprep.subr.bf16.mxu0 0
        %1226 = vmatpush1.bf16.msra.mxu0 0
        %1227 = vmatprep.subr.bf16.mxu0 0
        %1228 = vmatpush1.bf16.msra.mxu0 0
        %1229 = vmatprep.subr.bf16.mxu0 0
        %1230 = vmatpush1.bf16.msra.mxu0 0
        %1231 = vmatprep.subr.bf16.mxu0 0
        %1232 = vmatpush1.bf16.msra.mxu0 0
        %1233 = vmatprep.mubr.bf16.mxu0 0
        %1234 = vmatmul.mubr.bf16.gmra.mrb[0].mxu0 %v1199
        %v1235 = vpop.f32.mrb[0].mxu0
        %v1236 = vadd.f32 %v1184, %v1235
        %v1237 = vpop.f32.mrb[0].mxu0
        %v1238 = vpop.f32.mrb[0].mxu0
        %v1239 = vpop.f32.mrb[0].mxu0
        %1240 = vdwg.mxu0
        %v1241 = vmul.f32 %v1236, 0.5
        %v1242 = vrcp.pop 1.4142135
        %v1243 = vmul.f32 %v1236, %v1242
        %v1244 = verf.f32.pop %v1243
        %v1245 = vadd.f32 %v1244, 1.0
        %v1246 = vmul.f32 %v1241, %v1245
        %v1247 = vpack.c.bf16 %v1246, %v1246
        %v1248 = vld [vmem:[%s11] sm:$0xf]
        %v1249 = vld [vmem:[%s11 + $0x4] sm:$0xf]
        %v1250 = vld [vmem:[%s11 + $0x8] sm:$0xf]
        %v1251 = vld [vmem:[%s11 + $0xc] sm:$0xf]
        %v1252 = vld [vmem:[%s11 + $0x10] sm:$0xf]
        %v1253 = vld [vmem:[%s11 + $0x14] sm:$0xf]
        %v1254 = vld [vmem:[%s11 + $0x18] sm:$0xf]
        %v1255 = vld [vmem:[%s11 + $0x1c] sm:$0xf]
        %v1256 = vld [vmem:[%s12] sm:$0x1]
        %v1258 = vlaneseq
        %v1259 = vshrl.u32 %v1258, 7
        %v1260 = vsub.s32 0, %v1259
        %v1261 = vrot.slane %v1256, %v1260
        %v1271 = vunpack.c.l.b16 %v1248
        %v1272 = vunpack.c.l.b16 %v1249
        %v1273 = vunpack.c.l.b16 %v1250
        %v1274 = vunpack.c.l.b16 %v1251
        %v1275 = vunpack.c.l.b16 %v1252
        %v1276 = vunpack.c.l.b16 %v1253
        %v1277 = vunpack.c.l.b16 %v1254
        %v1278 = vunpack.c.l.b16 %v1255
        %v1279 = vpack.c.b16 %v1272, %v1271
        %v1280 = vpack.c.b16 %v1274, %v1273
        %v1281 = vpack.c.b16 %v1276, %v1275
        %v1282 = vpack.c.b16 %v1278, %v1277
        %vm1287 = vcmask 523264
        %v1289 = vsel %vm1287, %v1247, 0
        %1291 = vmatprep.subr.bf16.mxu0 0
        %1292 = vmatpush1.bf16.msra.mxu0 %v1279
        %1293 = vmatprep.subr.bf16.mxu0 0
        %1294 = vmatpush1.bf16.msra.mxu0 %v1280
        %1295 = vmatprep.subr.bf16.mxu0 0
        %1296 = vmatpush1.bf16.msra.mxu0 %v1281
        %1297 = vmatprep.subr.bf16.mxu0 0
        %1298 = vmatpush1.bf16.msra.mxu0 %v1282
        %1299 = vmatprep.subr.bf16.mxu0 0
        %1300 = vmatpush1.bf16.msra.mxu0 0
        %1301 = vmatprep.subr.bf16.mxu0 0
        %1302 = vmatpush1.bf16.msra.mxu0 0
        %1303 = vmatprep.subr.bf16.mxu0 0
        %1304 = vmatpush1.bf16.msra.mxu0 0
        %1305 = vmatprep.subr.bf16.mxu0 0
        %1306 = vmatpush1.bf16.msra.mxu0 0
        %1307 = vmatprep.subr.bf16.mxu0 0
        %1308 = vmatpush1.bf16.msra.mxu0 0
        %1309 = vmatprep.subr.bf16.mxu0 0
        %1310 = vmatpush1.bf16.msra.mxu0 0
        %1311 = vmatprep.subr.bf16.mxu0 0
        %1312 = vmatpush1.bf16.msra.mxu0 0
        %1313 = vmatprep.subr.bf16.mxu0 0
        %1314 = vmatpush1.bf16.msra.mxu0 0
        %1315 = vmatprep.subr.bf16.mxu0 0
        %1316 = vmatpush1.bf16.msra.mxu0 0
        %1317 = vmatprep.subr.bf16.mxu0 0
        %1318 = vmatpush1.bf16.msra.mxu0 0
        %1319 = vmatprep.subr.bf16.mxu0 0
        %1320 = vmatpush1.bf16.msra.mxu0 0
        %1321 = vmatprep.subr.bf16.mxu0 0
        %1322 = vmatpush1.bf16.msra.mxu0 0
        %1323 = vmatprep.mubr.bf16.mxu0 0
        %1324 = vmatmul.mubr.bf16.gmra.mrb[0].mxu0 %v1289
        %v1325 = vpop.f32.mrb[0].mxu0
        %v1326 = vadd.f32 %v1261, %v1325
        %v1327 = vpop.f32.mrb[0].mxu0
        %v1328 = vpop.f32.mrb[0].mxu0
        %v1329 = vpop.f32.mrb[0].mxu0
        %1330 = vdwg.mxu0
        %v1331 = vadd.f32 %v1326, %v1142
        %1332 = vst.msk [vmem:[%s482] sm:$0xff] %vm491, %v1331
        %s1333 = sand.u32 %s316, 1
        %s1334 = scalar_lea.sflag [#allocation5], %s1333
        %s1335 = sand.u32 %s316, 1
        %s1336 = smul.addr %s1335, 8
        %s1337 = scalar_lea.vmem [#allocation11], %s1336
        // Predicated region
        $region89: #{tpu_custom_call.1} parent=71 // pred_check
          %p1338 = pneg %p326
        $region90: #{tpu_custom_call.1} parent=71 // pred_check_branch
          %1340 = sbr.rel (%p1338) target = $region92
        $region91: #{tpu_custom_call.1} parent=71 // pred_region
          %s1342 = ssub.s32 128, 128
          %1343 = vsyncadd %s1334, %s1342
          %s1344 = smul.addr %s30, 128
          %s1345 = scalar_lea.hbm %s13, %s1344
          %s1347 = sshll.u32 %s1337, 4
          %s1348 = int_to_ptr.vmem [resolvable:$true] %s1347
          %1350 = dma.vmem_to_hbm [thread:$0]  %s1348, 128, %s1345, %s1334
        $region92: #{tpu_custom_call.1} parent=71 // pred_fallthru
          _
      $region72: #{tpu_custom_call.1} parent=5 // pred_fallthru
        _
      %p1351 = scmp.le.s32.totalorder 2, %s25
      // Predicated region
      $region93: #{tpu_custom_call.1} parent=5 // pred_check
        %p1352 = pneg %p1351
      $region94: #{tpu_custom_call.1} parent=5 // pred_check_branch
        %1354 = sbr.rel (%p1352) target = $region96
      $region95: #{tpu_custom_call.1} parent=5 // pred_region
        %s1355 = ssub.s32 %s25, 2
        // Predicated region
        $region97: #{tpu_custom_call.1} parent=95 // pred_check
          %p1356 = pneg %p332
        $region98: #{tpu_custom_call.1} parent=95 // pred_check_branch
          %1358 = sbr.rel (%p1356) target = $region100
        $region99: #{tpu_custom_call.1} parent=95 // pred_region
          %s1359 = sand.u32 %s317, 1
          %s1360 = scalar_lea.sflag [#allocation5], %s1359
          %s1361 = sand.u32 %s317, 1
          %s1362 = smul.addr %s1361, 8
          %s1363 = scalar_lea.vmem [#allocation11], %s1362
          %1364 = dma.done %s1360, 128
        $region100: #{tpu_custom_call.1} parent=95 // pred_fallthru
          _
      $region96: #{tpu_custom_call.1} parent=5 // pred_fallthru
        _
    $region6: #{tpu_custom_call.1} parent=1 // loop_footer
      %s29 = sadd.s32 1, %s25
    $region7: #{tpu_custom_call.1} parent=1 // loop_footer_branch
      %24 = sbr.rel target = $region3
    $region8: #{tpu_custom_call.1} parent=1 // loop_exit
      _
    %1365 = vsyncpa [#allocation4], 1
    %s1366 = scalar_lea.sflag [#allocation4], 1
    %1367 = vsyncpa %s1366, 1
    %1368 = vsyncpa [#allocation7], 1
    %1369 = vsyncpa [#allocation10], 1
    %1370 = vsyncpa [#allocation5], 1
    %s1371 = scalar_lea.sflag [#allocation5], 1
    %1372 = vsyncpa %s1371, 1

</llo_original>
